<compile_context>
chip_gen: v5e
topology: v5e:2x2
jax: 0.10.0
libtpu: 0.0.40
codegen_flags: <defaults>
</compile_context>

<pallas_src>
import math
import jax
import jax.numpy as jnp
from jax import lax
from jax.experimental import pallas as pl
from jax.experimental.pallas import tpu as pltpu

# ----- hyperparameters (small, consistent with the module's __init__) -----
N_PARAMS = 5
EMBED_DIM = 32
N_HEADS = 4
HEAD_DIM = EMBED_DIM // N_HEADS
N_LAYERS = 2
DIM_FF = 64
MAX_LEN = 16
WAVELEN_FACT = 1.0e6
SEQ = 8
BATCH = 2
TOKEN_DIMS = (2, 2)                       # (occupation, spin)
TOK_FLAT = TOKEN_DIMS[0] * TOKEN_DIMS[1]  # 'o sp -> (o sp)'

# Row layout of the fused activation slab (batch interleaved, seq-major):
#   rows [0, NB)         : parameter embeddings, row = n*BATCH + b
#   rows [NB, NB_PAD)    : padded parameter rows (masked out as attention keys)
#   rows [NB_PAD, R)     : site-token embeddings, row = NB_PAD + s*BATCH + b
NB = N_PARAMS * BATCH                     # 10
NB_PAD = ((NB + 7) // 8) * 8              # 16 (also a multiple of BATCH)
assert NB_PAD % BATCH == 0
SB = SEQ * BATCH                          # 16
R = NB_PAD + SB                           # 32

# ----- packed weight slab layout: (TOTAL_ROWS, 128) f32, static row offsets -----
ROW_PE = 0          # rows  0:16  cols 0:32 : positional encoding + token bias
ROW_PARAMW = 16     # row  16     cols 0:32 : param embedding weight
ROW_PARAMB = 17     # row  17     cols 0:32 : param embedding bias
ROW_DEEMBB = 18     # row  18     cols 0:8  : de-embedding bias
ROW_TOKW = 24       # rows 24:28  cols 0:32 : token embedding weight (4, 32)
ROW_DEEMBW = 32     # rows 32:64  cols 0:8  : de-embedding weight (32, 8)
ROW_L0 = 64
LAYER_ROWS = 168
# per layer (relative to base):
#   +0:32    cols 0:96  wqkv  (Q columns pre-scaled by 1/sqrt(HEAD_DIM))
#   +32      cols 0:96  bqkv
#   +33 bo | +34 ln1_g | +35 ln1_b | +36 b2 | +37 ln2_g | +38 ln2_b   (cols 0:32)
#   +39      cols 0:64  b1
#   +40:72   cols 0:32  wo   (rows = head-major H*D, cols = E)
#   +72:104  cols 0:64  w1
#   +104:168 cols 0:32  w2
TOTAL_ROWS = ROW_L0 + N_LAYERS * LAYER_ROWS   # 400
W_COLS = 128


# ------------------------------ Pallas kernel -------------------------------
def _layer_norm(x, g, b, eps=1e-5):
    mu = jnp.mean(x, axis=-1, keepdims=True)
    xc = x - mu
    var = jnp.mean(xc * xc, axis=-1, keepdims=True)
    return xc * lax.rsqrt(var + eps) * g + b


def hubbard_forward_kernel(params_ref, tok_ref, w_ref, out_ref):
    f32 = jnp.float32
    bf16 = jnp.bfloat16

    # ----------------- embedding (SiteDegreeEmbedding) -----------------
    param_w = w_ref[ROW_PARAMW:ROW_PARAMW + 1, 0:EMBED_DIM]          # (1, E)
    param_b = w_ref[ROW_PARAMB:ROW_PARAMB + 1, 0:EMBED_DIM]          # (1, E)
    pe_tok = w_ref[ROW_PE:ROW_PE + SB, 0:EMBED_DIM]                  # (SB, E)
    tok_w = w_ref[ROW_TOKW:ROW_TOKW + TOK_FLAT, 0:EMBED_DIM]         # (4, E)

    p_emb = params_ref[...] * param_w + param_b                      # (NB_PAD, E)
    t_emb = jnp.dot(tok_ref[...], tok_w,
                    preferred_element_type=f32) + pe_tok             # (SB, E)
    x = jnp.concatenate([p_emb, t_emb], axis=0)                      # (R, E), f32

    # additive attention mask: same batch element only, padded rows never keys
    ri = lax.broadcasted_iota(jnp.int32, (R, R), 0)
    ci = lax.broadcasted_iota(jnp.int32, (R, R), 1)
    key_real = (ci < NB) | (ci >= NB_PAD)
    ok = ((ri % BATCH) == (ci % BATCH)) & key_real
    bias = jnp.where(ok, 0.0, -1e30).astype(f32)                     # (R, R), shared

    # -------- transformer encoder (post-LN, relu FF, dropout = identity) -------
    for l in range(N_LAYERS):
        base = ROW_L0 + l * LAYER_ROWS
        wqkv = w_ref[base:base + EMBED_DIM, 0:3 * EMBED_DIM].astype(bf16)
        bqkv = w_ref[base + 32:base + 33, 0:3 * EMBED_DIM]
        bo = w_ref[base + 33:base + 34, 0:EMBED_DIM]
        ln1_g = w_ref[base + 34:base + 35, 0:EMBED_DIM]
        ln1_b = w_ref[base + 35:base + 36, 0:EMBED_DIM]
        b2 = w_ref[base + 36:base + 37, 0:EMBED_DIM]
        ln2_g = w_ref[base + 37:base + 38, 0:EMBED_DIM]
        ln2_b = w_ref[base + 38:base + 39, 0:EMBED_DIM]
        bff1 = w_ref[base + 39:base + 40, 0:DIM_FF]
        wo = w_ref[base + 40:base + 72, 0:EMBED_DIM].astype(bf16)
        w1 = w_ref[base + 72:base + 104, 0:DIM_FF].astype(bf16)
        w2 = w_ref[base + 104:base + 168, 0:EMBED_DIM].astype(bf16)

        # fused QKV projection: one (R,E)@(E,3E) matmul (Q pre-scaled at init)
        qkv = jnp.dot(x.astype(bf16), wqkv,
                      preferred_element_type=f32) + bqkv             # (R, 3E), f32

        o_parts = []
        for h in range(N_HEADS):
            qh = qkv[:, h * HEAD_DIM:(h + 1) * HEAD_DIM].astype(bf16)
            kh = qkv[:, EMBED_DIM + h * HEAD_DIM:
                     EMBED_DIM + (h + 1) * HEAD_DIM].astype(bf16)
            vh = qkv[:, 2 * EMBED_DIM + h * HEAD_DIM:
                     2 * EMBED_DIM + (h + 1) * HEAD_DIM].astype(bf16)
            s = lax.dot_general(qh, kh, (((1,), (1,)), ((), ())),
                                preferred_element_type=f32) + bias   # (R, R), f32
            m = jnp.max(s, axis=-1, keepdims=True)
            p = jnp.exp(s - m)
            p = p * pl.reciprocal(jnp.sum(p, axis=-1, keepdims=True), approx=True)
            o_parts.append(jnp.dot(p.astype(bf16), vh,
                                   preferred_element_type=f32))      # (R, D)
        o_cat = jnp.concatenate(o_parts, axis=-1)                    # (R, H*D)

        # fused output projection (single matmul, no cross-head sum)
        attn = jnp.dot(o_cat.astype(bf16), wo,
                       preferred_element_type=f32) + bo              # (R, E)
        x = _layer_norm(x + attn, ln1_g, ln1_b)

        # feed-forward (relu)
        hmid = jnp.maximum(
            jnp.dot(x.astype(bf16), w1, preferred_element_type=f32) + bff1, 0.0)
        ff = jnp.dot(hmid.astype(bf16), w2, preferred_element_type=f32) + b2
        x = _layer_norm(x + ff, ln2_g, ln2_b)

    # ----------------- de-embedding (HubbardDeembedding) -----------------
    deemb_w = w_ref[ROW_DEEMBW:ROW_DEEMBW + EMBED_DIM, 0:2 * TOK_FLAT].astype(bf16)
    deemb_b = w_ref[ROW_DEEMBB:ROW_DEEMBB + 1, 0:2 * TOK_FLAT]
    xs = x[NB_PAD:R, :]                                              # (SB, E)
    heads = jnp.dot(xs.astype(bf16), deemb_w,
                    preferred_element_type=f32) + deemb_b            # (SB, 8)

    lg0 = heads[:, 0:2]          # prob logits, occupation 0  (cols = spin)
    lg1 = heads[:, 2:4]          # prob logits, occupation 1
    ph0 = heads[:, 4:6]          # phase,       occupation 0
    ph1 = heads[:, 6:8]          # phase,       occupation 1

    mm = jnp.maximum(lg0, lg1)                      # softmax over occupation dim
    e0 = jnp.exp(lg0 - mm)
    e1 = jnp.exp(lg1 - mm)
    inv = 1.0 / (e0 + e1)                           # exact: guarantees prob <= 1
    pr0 = e0 * inv
    pr1 = e1 * inv
    sel = pr1 > pr0                                 # argmax (ties -> occupation 0)
    prob = jnp.where(sel, pr1, pr0)                 # gather prob at argmax
    phase = jnp.where(sel, ph1, ph0)                # gather phase at argmax

    out_ref[...] = jnp.concatenate([prob, phase], axis=-1)           # (SB, 4)


# -------------------------------- JAX wrapper --------------------------------
def forward(p, params, tokens):
    assert params.shape[0] == N_PARAMS, \
        f"HubbardWaveFunction expects {N_PARAMS} parameters, got {params.shape[0]}"
    assert params.shape == (N_PARAMS, BATCH)
    assert tokens.shape == (SEQ, BATCH) + TOKEN_DIMS

    # free metadata reshapes only; pad the parameter block to the 16-row boundary
    params_r = jnp.pad(params.reshape(NB, 1).astype(jnp.float32),
                       ((0, NB_PAD - NB), (0, 0)))                   # (16, 1)
    tok2d = tokens.reshape(SB, TOK_FLAT).astype(jnp.float32)         # (16, 4)

    out = pl.pallas_call(
        hubbard_forward_kernel,
        out_shape=jax.ShapeDtypeStruct((SB, 2 * TOKEN_DIMS[1]), jnp.float32),
        grid=(1,),
        in_specs=[pl.BlockSpec((NB_PAD, 1), lambda i: (0, 0)),
                  pl.BlockSpec((SB, TOK_FLAT), lambda i: (0, 0)),
                  pl.BlockSpec((TOTAL_ROWS, W_COLS), lambda i: (0, 0))],
        out_specs=pl.BlockSpec((SB, 2 * TOKEN_DIMS[1]), lambda i: (0, 0)),
        compiler_params=pltpu.CompilerParams(dimension_semantics=("arbitrary",)),
    )(params_r, tok2d, p["w_slab"])

    prob = out[:, 0:TOKEN_DIMS[1]].reshape(SEQ, BATCH, TOKEN_DIMS[1])
    phase = out[:, TOKEN_DIMS[1]:2 * TOKEN_DIMS[1]].reshape(SEQ, BATCH, TOKEN_DIMS[1])
    return prob, phase


# ------------------------- deterministic weight init -------------------------
def position_encoding(seq_len, dim, wavelen_fact):
    pos = jnp.arange(seq_len, dtype=jnp.float32)[:, None]
    i = jnp.arange(0, dim, 2, dtype=jnp.float32)[None, :]
    angles = pos / jnp.power(wavelen_fact, i / dim)
    pe = jnp.zeros((seq_len, dim), jnp.float32)
    pe = pe.at[:, 0::2].set(jnp.sin(angles))
    pe = pe.at[:, 1::2].set(jnp.cos(angles))
    return pe


def init_model_params(key):
    ks = jax.random.split(key, 8)

    def dense(k, fan_in, shape):
        return jax.random.normal(k, shape, jnp.float32) / math.sqrt(fan_in)

    # embedding pieces
    pe = position_encoding(MAX_LEN, EMBED_DIM, WAVELEN_FACT)[:SEQ]          # (S, E)
    pe_rep = jnp.repeat(pe, BATCH, axis=0)                                  # (SB, E)
    tok_b = jnp.zeros((EMBED_DIM,), jnp.float32)
    pe_tok = pe_rep + tok_b[None, :]                                        # fold tok bias
    param_w = dense(ks[0], 1, (EMBED_DIM,))
    param_b = jnp.zeros((EMBED_DIM,), jnp.float32)
    tok_w = dense(ks[1], TOK_FLAT, (TOK_FLAT, EMBED_DIM))

    # de-embedding heads packed: cols [0:4] prob head, [4:8] phase head
    deemb_w = dense(ks[2], EMBED_DIM, (EMBED_DIM, 2 * TOK_FLAT))
    deemb_b = jnp.zeros((2 * TOK_FLAT,), jnp.float32)

    scale = 1.0 / math.sqrt(HEAD_DIM)

    W = jnp.zeros((TOTAL_ROWS, W_COLS), jnp.float32)
    W = W.at[ROW_PE:ROW_PE + SB, 0:EMBED_DIM].set(pe_tok)
    W = W.at[ROW_PARAMW, 0:EMBED_DIM].set(param_w)
    W = W.at[ROW_PARAMB, 0:EMBED_DIM].set(param_b)
    W = W.at[ROW_DEEMBB, 0:2 * TOK_FLAT].set(deemb_b)
    W = W.at[ROW_TOKW:ROW_TOKW + TOK_FLAT, 0:EMBED_DIM].set(tok_w)
    W = W.at[ROW_DEEMBW:ROW_DEEMBW + EMBED_DIM, 0:2 * TOK_FLAT].set(deemb_w)

    for l in range(N_LAYERS):
        kq, kk, kv, ko, k1, k2 = jax.random.split(ks[3 + l], 6)
        wq = dense(kq, EMBED_DIM, (EMBED_DIM, EMBED_DIM)) * scale   # fold 1/sqrt(D)
        wk = dense(kk, EMBED_DIM, (EMBED_DIM, EMBED_DIM))
        wv = dense(kv, EMBED_DIM, (EMBED_DIM, EMBED_DIM))
        wqkv = jnp.concatenate([wq, wk, wv], axis=1)                # (E, 3E), head-major
        bqkv = jnp.zeros((3 * EMBED_DIM,), jnp.float32)
        bqkv = bqkv.at[0:EMBED_DIM].multiply(scale)                 # scale Q bias too
        wo = dense(ko, EMBED_DIM, (EMBED_DIM, EMBED_DIM))           # (H*D, E)
        bo = jnp.zeros((EMBED_DIM,), jnp.float32)
        w1 = dense(k1, EMBED_DIM, (EMBED_DIM, DIM_FF))
        b1 = jnp.zeros((DIM_FF,), jnp.float32)
        w2 = dense(k2, DIM_FF, (DIM_FF, EMBED_DIM))
        b2 = jnp.zeros((EMBED_DIM,), jnp.float32)
        ln1_g = jnp.ones((EMBED_DIM,), jnp.float32)
        ln1_b = jnp.zeros((EMBED_DIM,), jnp.float32)
        ln2_g = jnp.ones((EMBED_DIM,), jnp.float32)
        ln2_b = jnp.zeros((EMBED_DIM,), jnp.float32)

        base = ROW_L0 + l * LAYER_ROWS
        W = W.at[base:base + EMBED_DIM, 0:3 * EMBED_DIM].set(wqkv)
        W = W.at[base + 32, 0:3 * EMBED_DIM].set(bqkv)
        W = W.at[base + 33, 0:EMBED_DIM].set(bo)
        W = W.at[base + 34, 0:EMBED_DIM].set(ln1_g)
        W = W.at[base + 35, 0:EMBED_DIM].set(ln1_b)
        W = W.at[base + 36, 0:EMBED_DIM].set(b2)
        W = W.at[base + 37, 0:EMBED_DIM].set(ln2_g)
        W = W.at[base + 38, 0:EMBED_DIM].set(ln2_b)
        W = W.at[base + 39, 0:DIM_FF].set(b1)
        W = W.at[base + 40:base + 72, 0:EMBED_DIM].set(wo)
        W = W.at[base + 72:base + 104, 0:DIM_FF].set(w1)
        W = W.at[base + 104:base + 168, 0:EMBED_DIM].set(w2)

    return {"w_slab": W}


# ----------------------------------- main ------------------------------------
if __name__ == "__main__":
    key = jax.random.PRNGKey(0)
    k_model, k_par, k_tok = jax.random.split(key, 3)

    model_p = init_model_params(k_model)

    # physical parameters: (n_params=5, batch)
    params = jax.random.normal(k_par, (N_PARAMS, BATCH), jnp.float32)
    # tokens: (seq, batch, occupation, spin) as float one-hot occupations per spin
    occ = jax.random.bernoulli(k_tok, 0.5, (SEQ, BATCH, TOKEN_DIMS[1])).astype(jnp.int32)
    tokens = jax.nn.one_hot(occ, TOKEN_DIMS[0], axis=-2, dtype=jnp.float32)  # (S,B,o,sp)

    fwd = jax.jit(lambda pr, tk: forward(model_p, pr, tk))
    prob, phase = fwd(params, tokens)
    jax.block_until_ready((prob, phase))

    assert prob.shape == (SEQ, BATCH, TOKEN_DIMS[1])
    assert phase.shape == (SEQ, BATCH, TOKEN_DIMS[1])
    assert bool(jnp.all(jnp.isfinite(prob))) and bool(jnp.all(jnp.isfinite(phase)))
    assert bool(jnp.all((prob > 0.0) & (prob <= 1.0)))
    print("KERNEL_OK")
</pallas_src>

<mosaic_0001>
module attributes {stable_mosaic.version = 11 : i64} {
  func.func @hubbard_forward_kernel(%arg0: i32, %arg1: memref<16x1xf32, #tpu.memory_space<vmem>>, %arg2: memref<16x4xf32, #tpu.memory_space<vmem>>, %arg3: memref<400x128xf32, #tpu.memory_space<vmem>>, %arg4: memref<16x4xf32, #tpu.memory_space<vmem>>) attributes {dimension_semantics = [#tpu.dimension_semantics<arbitrary>], iteration_bounds = array<i64: 1>, scalar_prefetch = 0 : i64, scratch_operands = 0 : i64, tpu.core_type = #tpu.core_type<tc>, window_params = [{pipeline_mode = #tpu.pipeline_mode<synchronous>, transform_indices = @transform_0, window_bounds = array<i64: 16, 1>}, {pipeline_mode = #tpu.pipeline_mode<synchronous>, transform_indices = @transform_1, window_bounds = array<i64: 16, 4>}, {pipeline_mode = #tpu.pipeline_mode<synchronous>, transform_indices = @transform_2, window_bounds = array<i64: 400, 128>}, {pipeline_mode = #tpu.pipeline_mode<synchronous>, transform_indices = @transform_3, window_bounds = array<i64: 16, 4>}]} {
    %c16 = arith.constant 16 : index
    %c0 = arith.constant 0 : index
    %0 = vector.load %arg3[%c16, %c0] : memref<400x128xf32, #tpu.memory_space<vmem>>, vector<1x32xf32>
    %c17 = arith.constant 17 : index
    %c0_0 = arith.constant 0 : index
    %1 = vector.load %arg3[%c17, %c0_0] : memref<400x128xf32, #tpu.memory_space<vmem>>, vector<1x32xf32>
    %c0_1 = arith.constant 0 : index
    %c0_2 = arith.constant 0 : index
    %2 = vector.load %arg3[%c0_1, %c0_2] : memref<400x128xf32, #tpu.memory_space<vmem>>, vector<16x32xf32>
    %c24 = arith.constant 24 : index
    %c0_3 = arith.constant 0 : index
    %3 = vector.load %arg3[%c24, %c0_3] : memref<400x128xf32, #tpu.memory_space<vmem>>, vector<4x32xf32>
    %c0_4 = arith.constant 0 : index
    %c0_5 = arith.constant 0 : index
    %4 = vector.load %arg1[%c0_4, %c0_5] : memref<16x1xf32, #tpu.memory_space<vmem>>, vector<16x1xf32>
    %5 = vector.broadcast %4 : vector<16x1xf32> to vector<16x32xf32>
    %6 = vector.broadcast %0 : vector<1x32xf32> to vector<16x32xf32>
    %7 = arith.mulf %5, %6 : vector<16x32xf32>
    %8 = vector.broadcast %1 : vector<1x32xf32> to vector<16x32xf32>
    %9 = arith.addf %7, %8 : vector<16x32xf32>
    %c0_6 = arith.constant 0 : index
    %c0_7 = arith.constant 0 : index
    %10 = vector.load %arg2[%c0_6, %c0_7] : memref<16x4xf32, #tpu.memory_space<vmem>>, vector<16x4xf32>
    %cst = arith.constant dense<0.000000e+00> : vector<16x32xf32>
    %11 = tpu.matmul %10, %3, %cst {dimension_numbers = #tpu.dot_dimension_numbers<[1], [0], [0], [1], [0, 0, 1, 1], [], []>} : vector<16x4xf32>, vector<4x32xf32>, vector<16x32xf32> -> vector<16x32xf32>
    %12 = arith.addf %11, %2 : vector<16x32xf32>
    %13 = tpu.concatenate %9, %12 in 0 : vector<16x32xf32>, vector<16x32xf32> -> vector<32x32xf32>
    %14 = tpu.iota {dimensions = array<i32: 0>} : vector<32x32xi32>
    %15 = tpu.iota {dimensions = array<i32: 1>} : vector<32x32xi32>
    %c10_i32 = arith.constant 10 : i32
    %16 = vector.broadcast %c10_i32 : i32 to vector<32x32xi32>
    %17 = arith.cmpi slt, %15, %16 : vector<32x32xi32>
    %c16_i32 = arith.constant 16 : i32
    %18 = vector.broadcast %c16_i32 : i32 to vector<32x32xi32>
    %19 = arith.cmpi sge, %15, %18 : vector<32x32xi32>
    %20 = arith.ori %17, %19 : vector<32x32xi1>
    %c2_i32 = arith.constant 2 : i32
    %c0_i32 = arith.constant 0 : i32
    %21 = arith.cmpi eq, %c2_i32, %c0_i32 : i32
    %c1_i32 = arith.constant 1 : i32
    %22 = arith.select %21, %c1_i32, %c2_i32 : i32
    %23 = vector.broadcast %22 : i32 to vector<32x32xi32>
    %24 = arith.remsi %14, %23 : vector<32x32xi32>
    %c0_i32_8 = arith.constant 0 : i32
    %25 = vector.broadcast %c0_i32_8 : i32 to vector<32x32xi32>
    %26 = arith.cmpi ne, %24, %25 : vector<32x32xi32>
    %c0_i32_9 = arith.constant 0 : i32
    %27 = vector.broadcast %c0_i32_9 : i32 to vector<32x32xi32>
    %28 = arith.cmpi slt, %24, %27 : vector<32x32xi32>
    %c0_i32_10 = arith.constant 0 : i32
    %29 = arith.cmpi slt, %22, %c0_i32_10 : i32
    %30 = vector.broadcast %29 : i1 to vector<32x32xi1>
    %31 = vector.broadcast %30 : vector<32x32xi1> to vector<32x32xi1>
    %32 = arith.xori %28, %31 : vector<32x32xi1>
    %33 = arith.andi %32, %26 : vector<32x32xi1>
    %34 = vector.broadcast %22 : i32 to vector<32x32xi32>
    %35 = arith.addi %24, %34 : vector<32x32xi32>
    %36 = arith.select %33, %35, %24 : vector<32x32xi1>, vector<32x32xi32>
    %c2_i32_11 = arith.constant 2 : i32
    %c0_i32_12 = arith.constant 0 : i32
    %37 = arith.cmpi eq, %c2_i32_11, %c0_i32_12 : i32
    %c1_i32_13 = arith.constant 1 : i32
    %38 = arith.select %37, %c1_i32_13, %c2_i32_11 : i32
    %39 = vector.broadcast %38 : i32 to vector<32x32xi32>
    %40 = arith.remsi %15, %39 : vector<32x32xi32>
    %c0_i32_14 = arith.constant 0 : i32
    %41 = vector.broadcast %c0_i32_14 : i32 to vector<32x32xi32>
    %42 = arith.cmpi ne, %40, %41 : vector<32x32xi32>
    %c0_i32_15 = arith.constant 0 : i32
    %43 = vector.broadcast %c0_i32_15 : i32 to vector<32x32xi32>
    %44 = arith.cmpi slt, %40, %43 : vector<32x32xi32>
    %c0_i32_16 = arith.constant 0 : i32
    %45 = arith.cmpi slt, %38, %c0_i32_16 : i32
    %46 = vector.broadcast %45 : i1 to vector<32x32xi1>
    %47 = vector.broadcast %46 : vector<32x32xi1> to vector<32x32xi1>
    %48 = arith.xori %44, %47 : vector<32x32xi1>
    %49 = arith.andi %48, %42 : vector<32x32xi1>
    %50 = vector.broadcast %38 : i32 to vector<32x32xi32>
    %51 = arith.addi %40, %50 : vector<32x32xi32>
    %52 = arith.select %49, %51, %40 : vector<32x32xi1>, vector<32x32xi32>
    %53 = arith.cmpi eq, %36, %52 : vector<32x32xi32>
    %54 = arith.andi %53, %20 : vector<32x32xi1>
    %cst_17 = arith.constant 0.000000e+00 : f32
    %cst_18 = arith.constant -1.000000e+30 : f32
    %55 = vector.broadcast %cst_17 : f32 to vector<32x32xf32>
    %56 = vector.broadcast %cst_18 : f32 to vector<32x32xf32>
    %57 = arith.select %54, %55, %56 : vector<32x32xi1>, vector<32x32xf32>
    %c64 = arith.constant 64 : index
    %c0_19 = arith.constant 0 : index
    %58 = vector.load %arg3[%c64, %c0_19] : memref<400x128xf32, #tpu.memory_space<vmem>>, vector<32x96xf32>
    %59 = arith.truncf %58 : vector<32x96xf32> to vector<32x96xbf16>
    %c96 = arith.constant 96 : index
    %c0_20 = arith.constant 0 : index
    %60 = vector.load %arg3[%c96, %c0_20] : memref<400x128xf32, #tpu.memory_space<vmem>>, vector<1x96xf32>
    %c97 = arith.constant 97 : index
    %c0_21 = arith.constant 0 : index
    %61 = vector.load %arg3[%c97, %c0_21] : memref<400x128xf32, #tpu.memory_space<vmem>>, vector<1x32xf32>
    %c98 = arith.constant 98 : index
    %c0_22 = arith.constant 0 : index
    %62 = vector.load %arg3[%c98, %c0_22] : memref<400x128xf32, #tpu.memory_space<vmem>>, vector<1x32xf32>
    %c99 = arith.constant 99 : index
    %c0_23 = arith.constant 0 : index
    %63 = vector.load %arg3[%c99, %c0_23] : memref<400x128xf32, #tpu.memory_space<vmem>>, vector<1x32xf32>
    %c100 = arith.constant 100 : index
    %c0_24 = arith.constant 0 : index
    %64 = vector.load %arg3[%c100, %c0_24] : memref<400x128xf32, #tpu.memory_space<vmem>>, vector<1x32xf32>
    %c101 = arith.constant 101 : index
    %c0_25 = arith.constant 0 : index
    %65 = vector.load %arg3[%c101, %c0_25] : memref<400x128xf32, #tpu.memory_space<vmem>>, vector<1x32xf32>
    %c102 = arith.constant 102 : index
    %c0_26 = arith.constant 0 : index
    %66 = vector.load %arg3[%c102, %c0_26] : memref<400x128xf32, #tpu.memory_space<vmem>>, vector<1x32xf32>
    %c103 = arith.constant 103 : index
    %c0_27 = arith.constant 0 : index
    %67 = vector.load %arg3[%c103, %c0_27] : memref<400x128xf32, #tpu.memory_space<vmem>>, vector<1x64xf32>
    %c104 = arith.constant 104 : index
    %c0_28 = arith.constant 0 : index
    %68 = vector.load %arg3[%c104, %c0_28] : memref<400x128xf32, #tpu.memory_space<vmem>>, vector<32x32xf32>
    %69 = arith.truncf %68 : vector<32x32xf32> to vector<32x32xbf16>
    %c136 = arith.constant 136 : index
    %c0_29 = arith.constant 0 : index
    %70 = vector.load %arg3[%c136, %c0_29] : memref<400x128xf32, #tpu.memory_space<vmem>>, vector<32x64xf32>
    %71 = arith.truncf %70 : vector<32x64xf32> to vector<32x64xbf16>
    %c168 = arith.constant 168 : index
    %c0_30 = arith.constant 0 : index
    %72 = vector.load %arg3[%c168, %c0_30] : memref<400x128xf32, #tpu.memory_space<vmem>>, vector<64x32xf32>
    %73 = arith.truncf %72 : vector<64x32xf32> to vector<64x32xbf16>
    %74 = arith.truncf %13 : vector<32x32xf32> to vector<32x32xbf16>
    %cst_31 = arith.constant dense<0.000000e+00> : vector<32x96xf32>
    %75 = tpu.matmul %74, %59, %cst_31 {dimension_numbers = #tpu.dot_dimension_numbers<[1], [0], [0], [1], [0, 0, 1, 1], [], []>} : vector<32x32xbf16>, vector<32x96xbf16>, vector<32x96xf32> -> vector<32x96xf32>
    %76 = vector.broadcast %60 : vector<1x96xf32> to vector<32x96xf32>
    %77 = arith.addf %75, %76 : vector<32x96xf32>
    %78 = vector.extract_strided_slice %77 {offsets = [0, 0], sizes = [32, 8], strides = [1, 1]} : vector<32x96xf32> to vector<32x8xf32>
    %79 = arith.truncf %78 : vector<32x8xf32> to vector<32x8xbf16>
    %80 = vector.extract_strided_slice %77 {offsets = [0, 32], sizes = [32, 8], strides = [1, 1]} : vector<32x96xf32> to vector<32x8xf32>
    %81 = arith.truncf %80 : vector<32x8xf32> to vector<32x8xbf16>
    %82 = vector.extract_strided_slice %77 {offsets = [0, 64], sizes = [32, 8], strides = [1, 1]} : vector<32x96xf32> to vector<32x8xf32>
    %83 = arith.truncf %82 : vector<32x8xf32> to vector<32x8xbf16>
    %cst_32 = arith.constant dense<0.000000e+00> : vector<32x32xf32>
    %84 = tpu.matmul %79, %81, %cst_32 {dimension_numbers = #tpu.dot_dimension_numbers<[1], [1], [0], [0], [0, 0, 1, 0], [], []>} : vector<32x8xbf16>, vector<32x8xbf16>, vector<32x32xf32> -> vector<32x32xf32>
    %85 = arith.addf %84, %57 : vector<32x32xf32>
    %cst_33 = arith.constant dense<0xFF800000> : vector<32xf32>
    %86 = vector.multi_reduction <maximumf>, %85, %cst_33 [1] : vector<32x32xf32> to vector<32xf32>
    %87 = vector.shape_cast %86 : vector<32xf32> to vector<32x1xf32>
    %88 = vector.broadcast %87 : vector<32x1xf32> to vector<32x32xf32>
    %89 = arith.subf %85, %88 : vector<32x32xf32>
    %90 = math.exp %89 : vector<32x32xf32>
    %cst_34 = arith.constant dense<0.000000e+00> : vector<32xf32>
    %91 = vector.multi_reduction <add>, %90, %cst_34 [1] : vector<32x32xf32> to vector<32xf32>
    %92 = vector.shape_cast %91 : vector<32xf32> to vector<32x1xf32>
    %93 = tpu.reciprocal %92 {approx = true} : vector<32x1xf32> -> vector<32x1xf32>
    %94 = vector.broadcast %93 : vector<32x1xf32> to vector<32x32xf32>
    %95 = arith.mulf %90, %94 : vector<32x32xf32>
    %96 = arith.truncf %95 : vector<32x32xf32> to vector<32x32xbf16>
    %cst_35 = arith.constant dense<0.000000e+00> : vector<32x8xf32>
    %97 = tpu.matmul %96, %83, %cst_35 {dimension_numbers = #tpu.dot_dimension_numbers<[1], [0], [0], [1], [0, 0, 1, 1], [], []>} : vector<32x32xbf16>, vector<32x8xbf16>, vector<32x8xf32> -> vector<32x8xf32>
    %98 = vector.extract_strided_slice %77 {offsets = [0, 8], sizes = [32, 8], strides = [1, 1]} : vector<32x96xf32> to vector<32x8xf32>
    %99 = arith.truncf %98 : vector<32x8xf32> to vector<32x8xbf16>
    %100 = vector.extract_strided_slice %77 {offsets = [0, 40], sizes = [32, 8], strides = [1, 1]} : vector<32x96xf32> to vector<32x8xf32>
    %101 = arith.truncf %100 : vector<32x8xf32> to vector<32x8xbf16>
    %102 = vector.extract_strided_slice %77 {offsets = [0, 72], sizes = [32, 8], strides = [1, 1]} : vector<32x96xf32> to vector<32x8xf32>
    %103 = arith.truncf %102 : vector<32x8xf32> to vector<32x8xbf16>
    %cst_36 = arith.constant dense<0.000000e+00> : vector<32x32xf32>
    %104 = tpu.matmul %99, %101, %cst_36 {dimension_numbers = #tpu.dot_dimension_numbers<[1], [1], [0], [0], [0, 0, 1, 0], [], []>} : vector<32x8xbf16>, vector<32x8xbf16>, vector<32x32xf32> -> vector<32x32xf32>
    %105 = arith.addf %104, %57 : vector<32x32xf32>
    %cst_37 = arith.constant dense<0xFF800000> : vector<32xf32>
    %106 = vector.multi_reduction <maximumf>, %105, %cst_37 [1] : vector<32x32xf32> to vector<32xf32>
    %107 = vector.shape_cast %106 : vector<32xf32> to vector<32x1xf32>
    %108 = vector.broadcast %107 : vector<32x1xf32> to vector<32x32xf32>
    %109 = arith.subf %105, %108 : vector<32x32xf32>
    %110 = math.exp %109 : vector<32x32xf32>
    %cst_38 = arith.constant dense<0.000000e+00> : vector<32xf32>
    %111 = vector.multi_reduction <add>, %110, %cst_38 [1] : vector<32x32xf32> to vector<32xf32>
    %112 = vector.shape_cast %111 : vector<32xf32> to vector<32x1xf32>
    %113 = tpu.reciprocal %112 {approx = true} : vector<32x1xf32> -> vector<32x1xf32>
    %114 = vector.broadcast %113 : vector<32x1xf32> to vector<32x32xf32>
    %115 = arith.mulf %110, %114 : vector<32x32xf32>
    %116 = arith.truncf %115 : vector<32x32xf32> to vector<32x32xbf16>
    %cst_39 = arith.constant dense<0.000000e+00> : vector<32x8xf32>
    %117 = tpu.matmul %116, %103, %cst_39 {dimension_numbers = #tpu.dot_dimension_numbers<[1], [0], [0], [1], [0, 0, 1, 1], [], []>} : vector<32x32xbf16>, vector<32x8xbf16>, vector<32x8xf32> -> vector<32x8xf32>
    %118 = vector.extract_strided_slice %77 {offsets = [0, 16], sizes = [32, 8], strides = [1, 1]} : vector<32x96xf32> to vector<32x8xf32>
    %119 = arith.truncf %118 : vector<32x8xf32> to vector<32x8xbf16>
    %120 = vector.extract_strided_slice %77 {offsets = [0, 48], sizes = [32, 8], strides = [1, 1]} : vector<32x96xf32> to vector<32x8xf32>
    %121 = arith.truncf %120 : vector<32x8xf32> to vector<32x8xbf16>
    %122 = vector.extract_strided_slice %77 {offsets = [0, 80], sizes = [32, 8], strides = [1, 1]} : vector<32x96xf32> to vector<32x8xf32>
    %123 = arith.truncf %122 : vector<32x8xf32> to vector<32x8xbf16>
    %cst_40 = arith.constant dense<0.000000e+00> : vector<32x32xf32>
    %124 = tpu.matmul %119, %121, %cst_40 {dimension_numbers = #tpu.dot_dimension_numbers<[1], [1], [0], [0], [0, 0, 1, 0], [], []>} : vector<32x8xbf16>, vector<32x8xbf16>, vector<32x32xf32> -> vector<32x32xf32>
    %125 = arith.addf %124, %57 : vector<32x32xf32>
    %cst_41 = arith.constant dense<0xFF800000> : vector<32xf32>
    %126 = vector.multi_reduction <maximumf>, %125, %cst_41 [1] : vector<32x32xf32> to vector<32xf32>
    %127 = vector.shape_cast %126 : vector<32xf32> to vector<32x1xf32>
    %128 = vector.broadcast %127 : vector<32x1xf32> to vector<32x32xf32>
    %129 = arith.subf %125, %128 : vector<32x32xf32>
    %130 = math.exp %129 : vector<32x32xf32>
    %cst_42 = arith.constant dense<0.000000e+00> : vector<32xf32>
    %131 = vector.multi_reduction <add>, %130, %cst_42 [1] : vector<32x32xf32> to vector<32xf32>
    %132 = vector.shape_cast %131 : vector<32xf32> to vector<32x1xf32>
    %133 = tpu.reciprocal %132 {approx = true} : vector<32x1xf32> -> vector<32x1xf32>
    %134 = vector.broadcast %133 : vector<32x1xf32> to vector<32x32xf32>
    %135 = arith.mulf %130, %134 : vector<32x32xf32>
    %136 = arith.truncf %135 : vector<32x32xf32> to vector<32x32xbf16>
    %cst_43 = arith.constant dense<0.000000e+00> : vector<32x8xf32>
    %137 = tpu.matmul %136, %123, %cst_43 {dimension_numbers = #tpu.dot_dimension_numbers<[1], [0], [0], [1], [0, 0, 1, 1], [], []>} : vector<32x32xbf16>, vector<32x8xbf16>, vector<32x8xf32> -> vector<32x8xf32>
    %138 = vector.extract_strided_slice %77 {offsets = [0, 24], sizes = [32, 8], strides = [1, 1]} : vector<32x96xf32> to vector<32x8xf32>
    %139 = arith.truncf %138 : vector<32x8xf32> to vector<32x8xbf16>
    %140 = vector.extract_strided_slice %77 {offsets = [0, 56], sizes = [32, 8], strides = [1, 1]} : vector<32x96xf32> to vector<32x8xf32>
    %141 = arith.truncf %140 : vector<32x8xf32> to vector<32x8xbf16>
    %142 = vector.extract_strided_slice %77 {offsets = [0, 88], sizes = [32, 8], strides = [1, 1]} : vector<32x96xf32> to vector<32x8xf32>
    %143 = arith.truncf %142 : vector<32x8xf32> to vector<32x8xbf16>
    %cst_44 = arith.constant dense<0.000000e+00> : vector<32x32xf32>
    %144 = tpu.matmul %139, %141, %cst_44 {dimension_numbers = #tpu.dot_dimension_numbers<[1], [1], [0], [0], [0, 0, 1, 0], [], []>} : vector<32x8xbf16>, vector<32x8xbf16>, vector<32x32xf32> -> vector<32x32xf32>
    %145 = arith.addf %144, %57 : vector<32x32xf32>
    %cst_45 = arith.constant dense<0xFF800000> : vector<32xf32>
    %146 = vector.multi_reduction <maximumf>, %145, %cst_45 [1] : vector<32x32xf32> to vector<32xf32>
    %147 = vector.shape_cast %146 : vector<32xf32> to vector<32x1xf32>
    %148 = vector.broadcast %147 : vector<32x1xf32> to vector<32x32xf32>
    %149 = arith.subf %145, %148 : vector<32x32xf32>
    %150 = math.exp %149 : vector<32x32xf32>
    %cst_46 = arith.constant dense<0.000000e+00> : vector<32xf32>
    %151 = vector.multi_reduction <add>, %150, %cst_46 [1] : vector<32x32xf32> to vector<32xf32>
    %152 = vector.shape_cast %151 : vector<32xf32> to vector<32x1xf32>
    %153 = tpu.reciprocal %152 {approx = true} : vector<32x1xf32> -> vector<32x1xf32>
    %154 = vector.broadcast %153 : vector<32x1xf32> to vector<32x32xf32>
    %155 = arith.mulf %150, %154 : vector<32x32xf32>
    %156 = arith.truncf %155 : vector<32x32xf32> to vector<32x32xbf16>
    %cst_47 = arith.constant dense<0.000000e+00> : vector<32x8xf32>
    %157 = tpu.matmul %156, %143, %cst_47 {dimension_numbers = #tpu.dot_dimension_numbers<[1], [0], [0], [1], [0, 0, 1, 1], [], []>} : vector<32x32xbf16>, vector<32x8xbf16>, vector<32x8xf32> -> vector<32x8xf32>
    %158 = tpu.concatenate %97, %117, %137, %157 in 1 : vector<32x8xf32>, vector<32x8xf32>, vector<32x8xf32>, vector<32x8xf32> -> vector<32x32xf32>
    %159 = arith.truncf %158 : vector<32x32xf32> to vector<32x32xbf16>
    %cst_48 = arith.constant dense<0.000000e+00> : vector<32x32xf32>
    %160 = tpu.matmul %159, %69, %cst_48 {dimension_numbers = #tpu.dot_dimension_numbers<[1], [0], [0], [1], [0, 0, 1, 1], [], []>} : vector<32x32xbf16>, vector<32x32xbf16>, vector<32x32xf32> -> vector<32x32xf32>
    %161 = vector.broadcast %61 : vector<1x32xf32> to vector<32x32xf32>
    %162 = arith.addf %160, %161 : vector<32x32xf32>
    %163 = arith.addf %13, %162 : vector<32x32xf32>
    %cst_49 = arith.constant dense<0.000000e+00> : vector<32xf32>
    %164 = vector.multi_reduction <add>, %163, %cst_49 [1] : vector<32x32xf32> to vector<32xf32>
    %165 = vector.shape_cast %164 : vector<32xf32> to vector<32x1xf32>
    %cst_50 = arith.constant 3.200000e+01 : f32
    %166 = vector.broadcast %cst_50 : f32 to vector<32x1xf32>
    %167 = arith.divf %165, %166 : vector<32x1xf32>
    %168 = vector.broadcast %167 : vector<32x1xf32> to vector<32x32xf32>
    %169 = arith.subf %163, %168 : vector<32x32xf32>
    %170 = arith.mulf %169, %169 : vector<32x32xf32>
    %cst_51 = arith.constant dense<0.000000e+00> : vector<32xf32>
    %171 = vector.multi_reduction <add>, %170, %cst_51 [1] : vector<32x32xf32> to vector<32xf32>
    %172 = vector.shape_cast %171 : vector<32xf32> to vector<32x1xf32>
    %cst_52 = arith.constant 3.200000e+01 : f32
    %173 = vector.broadcast %cst_52 : f32 to vector<32x1xf32>
    %174 = arith.divf %172, %173 : vector<32x1xf32>
    %cst_53 = arith.constant 9.99999974E-6 : f32
    %175 = vector.broadcast %cst_53 : f32 to vector<32x1xf32>
    %176 = arith.addf %174, %175 : vector<32x1xf32>
    %177 = math.rsqrt %176 : vector<32x1xf32>
    %178 = vector.broadcast %177 : vector<32x1xf32> to vector<32x32xf32>
    %179 = arith.mulf %169, %178 : vector<32x32xf32>
    %180 = vector.broadcast %62 : vector<1x32xf32> to vector<32x32xf32>
    %181 = arith.mulf %179, %180 : vector<32x32xf32>
    %182 = vector.broadcast %63 : vector<1x32xf32> to vector<32x32xf32>
    %183 = arith.addf %181, %182 : vector<32x32xf32>
    %184 = arith.truncf %183 : vector<32x32xf32> to vector<32x32xbf16>
    %cst_54 = arith.constant dense<0.000000e+00> : vector<32x64xf32>
    %185 = tpu.matmul %184, %71, %cst_54 {dimension_numbers = #tpu.dot_dimension_numbers<[1], [0], [0], [1], [0, 0, 1, 1], [], []>} : vector<32x32xbf16>, vector<32x64xbf16>, vector<32x64xf32> -> vector<32x64xf32>
    %186 = vector.broadcast %67 : vector<1x64xf32> to vector<32x64xf32>
    %187 = arith.addf %185, %186 : vector<32x64xf32>
    %cst_55 = arith.constant 0.000000e+00 : f32
    %188 = vector.broadcast %cst_55 : f32 to vector<32x64xf32>
    %189 = arith.maximumf %187, %188 : vector<32x64xf32>
    %190 = arith.truncf %189 : vector<32x64xf32> to vector<32x64xbf16>
    %cst_56 = arith.constant dense<0.000000e+00> : vector<32x32xf32>
    %191 = tpu.matmul %190, %73, %cst_56 {dimension_numbers = #tpu.dot_dimension_numbers<[1], [0], [0], [1], [0, 0, 1, 1], [], []>} : vector<32x64xbf16>, vector<64x32xbf16>, vector<32x32xf32> -> vector<32x32xf32>
    %192 = vector.broadcast %64 : vector<1x32xf32> to vector<32x32xf32>
    %193 = arith.addf %191, %192 : vector<32x32xf32>
    %194 = arith.addf %183, %193 : vector<32x32xf32>
    %cst_57 = arith.constant dense<0.000000e+00> : vector<32xf32>
    %195 = vector.multi_reduction <add>, %194, %cst_57 [1] : vector<32x32xf32> to vector<32xf32>
    %196 = vector.shape_cast %195 : vector<32xf32> to vector<32x1xf32>
    %cst_58 = arith.constant 3.200000e+01 : f32
    %197 = vector.broadcast %cst_58 : f32 to vector<32x1xf32>
    %198 = arith.divf %196, %197 : vector<32x1xf32>
    %199 = vector.broadcast %198 : vector<32x1xf32> to vector<32x32xf32>
    %200 = arith.subf %194, %199 : vector<32x32xf32>
    %201 = arith.mulf %200, %200 : vector<32x32xf32>
    %cst_59 = arith.constant dense<0.000000e+00> : vector<32xf32>
    %202 = vector.multi_reduction <add>, %201, %cst_59 [1] : vector<32x32xf32> to vector<32xf32>
    %203 = vector.shape_cast %202 : vector<32xf32> to vector<32x1xf32>
    %cst_60 = arith.constant 3.200000e+01 : f32
    %204 = vector.broadcast %cst_60 : f32 to vector<32x1xf32>
    %205 = arith.divf %203, %204 : vector<32x1xf32>
    %cst_61 = arith.constant 9.99999974E-6 : f32
    %206 = vector.broadcast %cst_61 : f32 to vector<32x1xf32>
    %207 = arith.addf %205, %206 : vector<32x1xf32>
    %208 = math.rsqrt %207 : vector<32x1xf32>
    %209 = vector.broadcast %208 : vector<32x1xf32> to vector<32x32xf32>
    %210 = arith.mulf %200, %209 : vector<32x32xf32>
    %211 = vector.broadcast %65 : vector<1x32xf32> to vector<32x32xf32>
    %212 = arith.mulf %210, %211 : vector<32x32xf32>
    %213 = vector.broadcast %66 : vector<1x32xf32> to vector<32x32xf32>
    %214 = arith.addf %212, %213 : vector<32x32xf32>
    %c232 = arith.constant 232 : index
    %c0_62 = arith.constant 0 : index
    %215 = vector.load %arg3[%c232, %c0_62] : memref<400x128xf32, #tpu.memory_space<vmem>>, vector<32x96xf32>
    %216 = arith.truncf %215 : vector<32x96xf32> to vector<32x96xbf16>
    %c264 = arith.constant 264 : index
    %c0_63 = arith.constant 0 : index
    %217 = vector.load %arg3[%c264, %c0_63] : memref<400x128xf32, #tpu.memory_space<vmem>>, vector<1x96xf32>
    %c265 = arith.constant 265 : index
    %c0_64 = arith.constant 0 : index
    %218 = vector.load %arg3[%c265, %c0_64] : memref<400x128xf32, #tpu.memory_space<vmem>>, vector<1x32xf32>
    %c266 = arith.constant 266 : index
    %c0_65 = arith.constant 0 : index
    %219 = vector.load %arg3[%c266, %c0_65] : memref<400x128xf32, #tpu.memory_space<vmem>>, vector<1x32xf32>
    %c267 = arith.constant 267 : index
    %c0_66 = arith.constant 0 : index
    %220 = vector.load %arg3[%c267, %c0_66] : memref<400x128xf32, #tpu.memory_space<vmem>>, vector<1x32xf32>
    %c268 = arith.constant 268 : index
    %c0_67 = arith.constant 0 : index
    %221 = vector.load %arg3[%c268, %c0_67] : memref<400x128xf32, #tpu.memory_space<vmem>>, vector<1x32xf32>
    %c269 = arith.constant 269 : index
    %c0_68 = arith.constant 0 : index
    %222 = vector.load %arg3[%c269, %c0_68] : memref<400x128xf32, #tpu.memory_space<vmem>>, vector<1x32xf32>
    %c270 = arith.constant 270 : index
    %c0_69 = arith.constant 0 : index
    %223 = vector.load %arg3[%c270, %c0_69] : memref<400x128xf32, #tpu.memory_space<vmem>>, vector<1x32xf32>
    %c271 = arith.constant 271 : index
    %c0_70 = arith.constant 0 : index
    %224 = vector.load %arg3[%c271, %c0_70] : memref<400x128xf32, #tpu.memory_space<vmem>>, vector<1x64xf32>
    %c272 = arith.constant 272 : index
    %c0_71 = arith.constant 0 : index
    %225 = vector.load %arg3[%c272, %c0_71] : memref<400x128xf32, #tpu.memory_space<vmem>>, vector<32x32xf32>
    %226 = arith.truncf %225 : vector<32x32xf32> to vector<32x32xbf16>
    %c304 = arith.constant 304 : index
    %c0_72 = arith.constant 0 : index
    %227 = vector.load %arg3[%c304, %c0_72] : memref<400x128xf32, #tpu.memory_space<vmem>>, vector<32x64xf32>
    %228 = arith.truncf %227 : vector<32x64xf32> to vector<32x64xbf16>
    %c336 = arith.constant 336 : index
    %c0_73 = arith.constant 0 : index
    %229 = vector.load %arg3[%c336, %c0_73] : memref<400x128xf32, #tpu.memory_space<vmem>>, vector<64x32xf32>
    %230 = arith.truncf %229 : vector<64x32xf32> to vector<64x32xbf16>
    %231 = arith.truncf %214 : vector<32x32xf32> to vector<32x32xbf16>
    %cst_74 = arith.constant dense<0.000000e+00> : vector<32x96xf32>
    %232 = tpu.matmul %231, %216, %cst_74 {dimension_numbers = #tpu.dot_dimension_numbers<[1], [0], [0], [1], [0, 0, 1, 1], [], []>} : vector<32x32xbf16>, vector<32x96xbf16>, vector<32x96xf32> -> vector<32x96xf32>
    %233 = vector.broadcast %217 : vector<1x96xf32> to vector<32x96xf32>
    %234 = arith.addf %232, %233 : vector<32x96xf32>
    %235 = vector.extract_strided_slice %234 {offsets = [0, 0], sizes = [32, 8], strides = [1, 1]} : vector<32x96xf32> to vector<32x8xf32>
    %236 = arith.truncf %235 : vector<32x8xf32> to vector<32x8xbf16>
    %237 = vector.extract_strided_slice %234 {offsets = [0, 32], sizes = [32, 8], strides = [1, 1]} : vector<32x96xf32> to vector<32x8xf32>
    %238 = arith.truncf %237 : vector<32x8xf32> to vector<32x8xbf16>
    %239 = vector.extract_strided_slice %234 {offsets = [0, 64], sizes = [32, 8], strides = [1, 1]} : vector<32x96xf32> to vector<32x8xf32>
    %240 = arith.truncf %239 : vector<32x8xf32> to vector<32x8xbf16>
    %cst_75 = arith.constant dense<0.000000e+00> : vector<32x32xf32>
    %241 = tpu.matmul %236, %238, %cst_75 {dimension_numbers = #tpu.dot_dimension_numbers<[1], [1], [0], [0], [0, 0, 1, 0], [], []>} : vector<32x8xbf16>, vector<32x8xbf16>, vector<32x32xf32> -> vector<32x32xf32>
    %242 = arith.addf %241, %57 : vector<32x32xf32>
    %cst_76 = arith.constant dense<0xFF800000> : vector<32xf32>
    %243 = vector.multi_reduction <maximumf>, %242, %cst_76 [1] : vector<32x32xf32> to vector<32xf32>
    %244 = vector.shape_cast %243 : vector<32xf32> to vector<32x1xf32>
    %245 = vector.broadcast %244 : vector<32x1xf32> to vector<32x32xf32>
    %246 = arith.subf %242, %245 : vector<32x32xf32>
    %247 = math.exp %246 : vector<32x32xf32>
    %cst_77 = arith.constant dense<0.000000e+00> : vector<32xf32>
    %248 = vector.multi_reduction <add>, %247, %cst_77 [1] : vector<32x32xf32> to vector<32xf32>
    %249 = vector.shape_cast %248 : vector<32xf32> to vector<32x1xf32>
    %250 = tpu.reciprocal %249 {approx = true} : vector<32x1xf32> -> vector<32x1xf32>
    %251 = vector.broadcast %250 : vector<32x1xf32> to vector<32x32xf32>
    %252 = arith.mulf %247, %251 : vector<32x32xf32>
    %253 = arith.truncf %252 : vector<32x32xf32> to vector<32x32xbf16>
    %cst_78 = arith.constant dense<0.000000e+00> : vector<32x8xf32>
    %254 = tpu.matmul %253, %240, %cst_78 {dimension_numbers = #tpu.dot_dimension_numbers<[1], [0], [0], [1], [0, 0, 1, 1], [], []>} : vector<32x32xbf16>, vector<32x8xbf16>, vector<32x8xf32> -> vector<32x8xf32>
    %255 = vector.extract_strided_slice %234 {offsets = [0, 8], sizes = [32, 8], strides = [1, 1]} : vector<32x96xf32> to vector<32x8xf32>
    %256 = arith.truncf %255 : vector<32x8xf32> to vector<32x8xbf16>
    %257 = vector.extract_strided_slice %234 {offsets = [0, 40], sizes = [32, 8], strides = [1, 1]} : vector<32x96xf32> to vector<32x8xf32>
    %258 = arith.truncf %257 : vector<32x8xf32> to vector<32x8xbf16>
    %259 = vector.extract_strided_slice %234 {offsets = [0, 72], sizes = [32, 8], strides = [1, 1]} : vector<32x96xf32> to vector<32x8xf32>
    %260 = arith.truncf %259 : vector<32x8xf32> to vector<32x8xbf16>
    %cst_79 = arith.constant dense<0.000000e+00> : vector<32x32xf32>
    %261 = tpu.matmul %256, %258, %cst_79 {dimension_numbers = #tpu.dot_dimension_numbers<[1], [1], [0], [0], [0, 0, 1, 0], [], []>} : vector<32x8xbf16>, vector<32x8xbf16>, vector<32x32xf32> -> vector<32x32xf32>
    %262 = arith.addf %261, %57 : vector<32x32xf32>
    %cst_80 = arith.constant dense<0xFF800000> : vector<32xf32>
    %263 = vector.multi_reduction <maximumf>, %262, %cst_80 [1] : vector<32x32xf32> to vector<32xf32>
    %264 = vector.shape_cast %263 : vector<32xf32> to vector<32x1xf32>
    %265 = vector.broadcast %264 : vector<32x1xf32> to vector<32x32xf32>
    %266 = arith.subf %262, %265 : vector<32x32xf32>
    %267 = math.exp %266 : vector<32x32xf32>
    %cst_81 = arith.constant dense<0.000000e+00> : vector<32xf32>
    %268 = vector.multi_reduction <add>, %267, %cst_81 [1] : vector<32x32xf32> to vector<32xf32>
    %269 = vector.shape_cast %268 : vector<32xf32> to vector<32x1xf32>
    %270 = tpu.reciprocal %269 {approx = true} : vector<32x1xf32> -> vector<32x1xf32>
    %271 = vector.broadcast %270 : vector<32x1xf32> to vector<32x32xf32>
    %272 = arith.mulf %267, %271 : vector<32x32xf32>
    %273 = arith.truncf %272 : vector<32x32xf32> to vector<32x32xbf16>
    %cst_82 = arith.constant dense<0.000000e+00> : vector<32x8xf32>
    %274 = tpu.matmul %273, %260, %cst_82 {dimension_numbers = #tpu.dot_dimension_numbers<[1], [0], [0], [1], [0, 0, 1, 1], [], []>} : vector<32x32xbf16>, vector<32x8xbf16>, vector<32x8xf32> -> vector<32x8xf32>
    %275 = vector.extract_strided_slice %234 {offsets = [0, 16], sizes = [32, 8], strides = [1, 1]} : vector<32x96xf32> to vector<32x8xf32>
    %276 = arith.truncf %275 : vector<32x8xf32> to vector<32x8xbf16>
    %277 = vector.extract_strided_slice %234 {offsets = [0, 48], sizes = [32, 8], strides = [1, 1]} : vector<32x96xf32> to vector<32x8xf32>
    %278 = arith.truncf %277 : vector<32x8xf32> to vector<32x8xbf16>
    %279 = vector.extract_strided_slice %234 {offsets = [0, 80], sizes = [32, 8], strides = [1, 1]} : vector<32x96xf32> to vector<32x8xf32>
    %280 = arith.truncf %279 : vector<32x8xf32> to vector<32x8xbf16>
    %cst_83 = arith.constant dense<0.000000e+00> : vector<32x32xf32>
    %281 = tpu.matmul %276, %278, %cst_83 {dimension_numbers = #tpu.dot_dimension_numbers<[1], [1], [0], [0], [0, 0, 1, 0], [], []>} : vector<32x8xbf16>, vector<32x8xbf16>, vector<32x32xf32> -> vector<32x32xf32>
    %282 = arith.addf %281, %57 : vector<32x32xf32>
    %cst_84 = arith.constant dense<0xFF800000> : vector<32xf32>
    %283 = vector.multi_reduction <maximumf>, %282, %cst_84 [1] : vector<32x32xf32> to vector<32xf32>
    %284 = vector.shape_cast %283 : vector<32xf32> to vector<32x1xf32>
    %285 = vector.broadcast %284 : vector<32x1xf32> to vector<32x32xf32>
    %286 = arith.subf %282, %285 : vector<32x32xf32>
    %287 = math.exp %286 : vector<32x32xf32>
    %cst_85 = arith.constant dense<0.000000e+00> : vector<32xf32>
    %288 = vector.multi_reduction <add>, %287, %cst_85 [1] : vector<32x32xf32> to vector<32xf32>
    %289 = vector.shape_cast %288 : vector<32xf32> to vector<32x1xf32>
    %290 = tpu.reciprocal %289 {approx = true} : vector<32x1xf32> -> vector<32x1xf32>
    %291 = vector.broadcast %290 : vector<32x1xf32> to vector<32x32xf32>
    %292 = arith.mulf %287, %291 : vector<32x32xf32>
    %293 = arith.truncf %292 : vector<32x32xf32> to vector<32x32xbf16>
    %cst_86 = arith.constant dense<0.000000e+00> : vector<32x8xf32>
    %294 = tpu.matmul %293, %280, %cst_86 {dimension_numbers = #tpu.dot_dimension_numbers<[1], [0], [0], [1], [0, 0, 1, 1], [], []>} : vector<32x32xbf16>, vector<32x8xbf16>, vector<32x8xf32> -> vector<32x8xf32>
    %295 = vector.extract_strided_slice %234 {offsets = [0, 24], sizes = [32, 8], strides = [1, 1]} : vector<32x96xf32> to vector<32x8xf32>
    %296 = arith.truncf %295 : vector<32x8xf32> to vector<32x8xbf16>
    %297 = vector.extract_strided_slice %234 {offsets = [0, 56], sizes = [32, 8], strides = [1, 1]} : vector<32x96xf32> to vector<32x8xf32>
    %298 = arith.truncf %297 : vector<32x8xf32> to vector<32x8xbf16>
    %299 = vector.extract_strided_slice %234 {offsets = [0, 88], sizes = [32, 8], strides = [1, 1]} : vector<32x96xf32> to vector<32x8xf32>
    %300 = arith.truncf %299 : vector<32x8xf32> to vector<32x8xbf16>
    %cst_87 = arith.constant dense<0.000000e+00> : vector<32x32xf32>
    %301 = tpu.matmul %296, %298, %cst_87 {dimension_numbers = #tpu.dot_dimension_numbers<[1], [1], [0], [0], [0, 0, 1, 0], [], []>} : vector<32x8xbf16>, vector<32x8xbf16>, vector<32x32xf32> -> vector<32x32xf32>
    %302 = arith.addf %301, %57 : vector<32x32xf32>
    %cst_88 = arith.constant dense<0xFF800000> : vector<32xf32>
    %303 = vector.multi_reduction <maximumf>, %302, %cst_88 [1] : vector<32x32xf32> to vector<32xf32>
    %304 = vector.shape_cast %303 : vector<32xf32> to vector<32x1xf32>
    %305 = vector.broadcast %304 : vector<32x1xf32> to vector<32x32xf32>
    %306 = arith.subf %302, %305 : vector<32x32xf32>
    %307 = math.exp %306 : vector<32x32xf32>
    %cst_89 = arith.constant dense<0.000000e+00> : vector<32xf32>
    %308 = vector.multi_reduction <add>, %307, %cst_89 [1] : vector<32x32xf32> to vector<32xf32>
    %309 = vector.shape_cast %308 : vector<32xf32> to vector<32x1xf32>
    %310 = tpu.reciprocal %309 {approx = true} : vector<32x1xf32> -> vector<32x1xf32>
    %311 = vector.broadcast %310 : vector<32x1xf32> to vector<32x32xf32>
    %312 = arith.mulf %307, %311 : vector<32x32xf32>
    %313 = arith.truncf %312 : vector<32x32xf32> to vector<32x32xbf16>
    %cst_90 = arith.constant dense<0.000000e+00> : vector<32x8xf32>
    %314 = tpu.matmul %313, %300, %cst_90 {dimension_numbers = #tpu.dot_dimension_numbers<[1], [0], [0], [1], [0, 0, 1, 1], [], []>} : vector<32x32xbf16>, vector<32x8xbf16>, vector<32x8xf32> -> vector<32x8xf32>
    %315 = tpu.concatenate %254, %274, %294, %314 in 1 : vector<32x8xf32>, vector<32x8xf32>, vector<32x8xf32>, vector<32x8xf32> -> vector<32x32xf32>
    %316 = arith.truncf %315 : vector<32x32xf32> to vector<32x32xbf16>
    %cst_91 = arith.constant dense<0.000000e+00> : vector<32x32xf32>
    %317 = tpu.matmul %316, %226, %cst_91 {dimension_numbers = #tpu.dot_dimension_numbers<[1], [0], [0], [1], [0, 0, 1, 1], [], []>} : vector<32x32xbf16>, vector<32x32xbf16>, vector<32x32xf32> -> vector<32x32xf32>
    %318 = vector.broadcast %218 : vector<1x32xf32> to vector<32x32xf32>
    %319 = arith.addf %317, %318 : vector<32x32xf32>
    %320 = arith.addf %214, %319 : vector<32x32xf32>
    %cst_92 = arith.constant dense<0.000000e+00> : vector<32xf32>
    %321 = vector.multi_reduction <add>, %320, %cst_92 [1] : vector<32x32xf32> to vector<32xf32>
    %322 = vector.shape_cast %321 : vector<32xf32> to vector<32x1xf32>
    %cst_93 = arith.constant 3.200000e+01 : f32
    %323 = vector.broadcast %cst_93 : f32 to vector<32x1xf32>
    %324 = arith.divf %322, %323 : vector<32x1xf32>
    %325 = vector.broadcast %324 : vector<32x1xf32> to vector<32x32xf32>
    %326 = arith.subf %320, %325 : vector<32x32xf32>
    %327 = arith.mulf %326, %326 : vector<32x32xf32>
    %cst_94 = arith.constant dense<0.000000e+00> : vector<32xf32>
    %328 = vector.multi_reduction <add>, %327, %cst_94 [1] : vector<32x32xf32> to vector<32xf32>
    %329 = vector.shape_cast %328 : vector<32xf32> to vector<32x1xf32>
    %cst_95 = arith.constant 3.200000e+01 : f32
    %330 = vector.broadcast %cst_95 : f32 to vector<32x1xf32>
    %331 = arith.divf %329, %330 : vector<32x1xf32>
    %cst_96 = arith.constant 9.99999974E-6 : f32
    %332 = vector.broadcast %cst_96 : f32 to vector<32x1xf32>
    %333 = arith.addf %331, %332 : vector<32x1xf32>
    %334 = math.rsqrt %333 : vector<32x1xf32>
    %335 = vector.broadcast %334 : vector<32x1xf32> to vector<32x32xf32>
    %336 = arith.mulf %326, %335 : vector<32x32xf32>
    %337 = vector.broadcast %219 : vector<1x32xf32> to vector<32x32xf32>
    %338 = arith.mulf %336, %337 : vector<32x32xf32>
    %339 = vector.broadcast %220 : vector<1x32xf32> to vector<32x32xf32>
    %340 = arith.addf %338, %339 : vector<32x32xf32>
    %341 = arith.truncf %340 : vector<32x32xf32> to vector<32x32xbf16>
    %cst_97 = arith.constant dense<0.000000e+00> : vector<32x64xf32>
    %342 = tpu.matmul %341, %228, %cst_97 {dimension_numbers = #tpu.dot_dimension_numbers<[1], [0], [0], [1], [0, 0, 1, 1], [], []>} : vector<32x32xbf16>, vector<32x64xbf16>, vector<32x64xf32> -> vector<32x64xf32>
    %343 = vector.broadcast %224 : vector<1x64xf32> to vector<32x64xf32>
    %344 = arith.addf %342, %343 : vector<32x64xf32>
    %cst_98 = arith.constant 0.000000e+00 : f32
    %345 = vector.broadcast %cst_98 : f32 to vector<32x64xf32>
    %346 = arith.maximumf %344, %345 : vector<32x64xf32>
    %347 = arith.truncf %346 : vector<32x64xf32> to vector<32x64xbf16>
    %cst_99 = arith.constant dense<0.000000e+00> : vector<32x32xf32>
    %348 = tpu.matmul %347, %230, %cst_99 {dimension_numbers = #tpu.dot_dimension_numbers<[1], [0], [0], [1], [0, 0, 1, 1], [], []>} : vector<32x64xbf16>, vector<64x32xbf16>, vector<32x32xf32> -> vector<32x32xf32>
    %349 = vector.broadcast %221 : vector<1x32xf32> to vector<32x32xf32>
    %350 = arith.addf %348, %349 : vector<32x32xf32>
    %351 = arith.addf %340, %350 : vector<32x32xf32>
    %cst_100 = arith.constant dense<0.000000e+00> : vector<32xf32>
    %352 = vector.multi_reduction <add>, %351, %cst_100 [1] : vector<32x32xf32> to vector<32xf32>
    %353 = vector.shape_cast %352 : vector<32xf32> to vector<32x1xf32>
    %cst_101 = arith.constant 3.200000e+01 : f32
    %354 = vector.broadcast %cst_101 : f32 to vector<32x1xf32>
    %355 = arith.divf %353, %354 : vector<32x1xf32>
    %356 = vector.broadcast %355 : vector<32x1xf32> to vector<32x32xf32>
    %357 = arith.subf %351, %356 : vector<32x32xf32>
    %358 = arith.mulf %357, %357 : vector<32x32xf32>
    %cst_102 = arith.constant dense<0.000000e+00> : vector<32xf32>
    %359 = vector.multi_reduction <add>, %358, %cst_102 [1] : vector<32x32xf32> to vector<32xf32>
    %360 = vector.shape_cast %359 : vector<32xf32> to vector<32x1xf32>
    %cst_103 = arith.constant 3.200000e+01 : f32
    %361 = vector.broadcast %cst_103 : f32 to vector<32x1xf32>
    %362 = arith.divf %360, %361 : vector<32x1xf32>
    %cst_104 = arith.constant 9.99999974E-6 : f32
    %363 = vector.broadcast %cst_104 : f32 to vector<32x1xf32>
    %364 = arith.addf %362, %363 : vector<32x1xf32>
    %365 = math.rsqrt %364 : vector<32x1xf32>
    %366 = vector.broadcast %365 : vector<32x1xf32> to vector<32x32xf32>
    %367 = arith.mulf %357, %366 : vector<32x32xf32>
    %368 = vector.broadcast %222 : vector<1x32xf32> to vector<32x32xf32>
    %369 = arith.mulf %367, %368 : vector<32x32xf32>
    %370 = vector.broadcast %223 : vector<1x32xf32> to vector<32x32xf32>
    %371 = arith.addf %369, %370 : vector<32x32xf32>
    %c32 = arith.constant 32 : index
    %c0_105 = arith.constant 0 : index
    %372 = vector.load %arg3[%c32, %c0_105] : memref<400x128xf32, #tpu.memory_space<vmem>>, vector<32x8xf32>
    %373 = arith.truncf %372 : vector<32x8xf32> to vector<32x8xbf16>
    %c18 = arith.constant 18 : index
    %c0_106 = arith.constant 0 : index
    %374 = vector.load %arg3[%c18, %c0_106] : memref<400x128xf32, #tpu.memory_space<vmem>>, vector<1x8xf32>
    %375 = vector.extract_strided_slice %371 {offsets = [16, 0], sizes = [16, 32], strides = [1, 1]} : vector<32x32xf32> to vector<16x32xf32>
    %376 = arith.truncf %375 : vector<16x32xf32> to vector<16x32xbf16>
    %cst_107 = arith.constant dense<0.000000e+00> : vector<16x8xf32>
    %377 = tpu.matmul %376, %373, %cst_107 {dimension_numbers = #tpu.dot_dimension_numbers<[1], [0], [0], [1], [0, 0, 1, 1], [], []>} : vector<16x32xbf16>, vector<32x8xbf16>, vector<16x8xf32> -> vector<16x8xf32>
    %378 = vector.broadcast %374 : vector<1x8xf32> to vector<16x8xf32>
    %379 = arith.addf %377, %378 : vector<16x8xf32>
    %380 = vector.extract_strided_slice %379 {offsets = [0, 0], sizes = [16, 2], strides = [1, 1]} : vector<16x8xf32> to vector<16x2xf32>
    %381 = vector.extract_strided_slice %379 {offsets = [0, 2], sizes = [16, 2], strides = [1, 1]} : vector<16x8xf32> to vector<16x2xf32>
    %382 = vector.extract_strided_slice %379 {offsets = [0, 4], sizes = [16, 2], strides = [1, 1]} : vector<16x8xf32> to vector<16x2xf32>
    %383 = vector.extract_strided_slice %379 {offsets = [0, 6], sizes = [16, 2], strides = [1, 1]} : vector<16x8xf32> to vector<16x2xf32>
    %384 = arith.maximumf %380, %381 : vector<16x2xf32>
    %385 = arith.subf %380, %384 : vector<16x2xf32>
    %386 = math.exp %385 : vector<16x2xf32>
    %387 = arith.subf %381, %384 : vector<16x2xf32>
    %388 = math.exp %387 : vector<16x2xf32>
    %389 = arith.addf %386, %388 : vector<16x2xf32>
    %cst_108 = arith.constant 1.000000e+00 : f32
    %390 = vector.broadcast %cst_108 : f32 to vector<16x2xf32>
    %391 = arith.divf %390, %389 : vector<16x2xf32>
    %392 = arith.mulf %386, %391 : vector<16x2xf32>
    %393 = arith.mulf %388, %391 : vector<16x2xf32>
    %394 = arith.cmpf ogt, %393, %392 : vector<16x2xf32>
    %395 = arith.select %394, %393, %392 : vector<16x2xi1>, vector<16x2xf32>
    %396 = arith.select %394, %383, %382 : vector<16x2xi1>, vector<16x2xf32>
    %397 = tpu.concatenate %395, %396 in 1 : vector<16x2xf32>, vector<16x2xf32> -> vector<16x4xf32>
    %c0_109 = arith.constant 0 : index
    %c0_110 = arith.constant 0 : index
    %398 = vector.load %arg4[%c0_109, %c0_110] : memref<16x4xf32, #tpu.memory_space<vmem>>, vector<16x4xf32>
    tpu.vector_store %arg4[%c0_109, %c0_110], %397 {strides = array<i32>} : memref<16x4xf32, #tpu.memory_space<vmem>>, vector<16x4xf32>,
    return
  }
  func.func @transform_0(%arg0: i32) -> (i32, i32) {
    %c0_i32 = arith.constant 0 : i32
    %c0_i32_0 = arith.constant 0 : i32
    %c0_i32_1 = arith.constant 0 : i32
    return %c0_i32, %c0_i32_0 : i32, i32
  }
  func.func @transform_1(%arg0: i32) -> (i32, i32) {
    %c0_i32 = arith.constant 0 : i32
    %c0_i32_0 = arith.constant 0 : i32
    %c0_i32_1 = arith.constant 0 : i32
    return %c0_i32, %c0_i32_0 : i32, i32
  }
  func.func @transform_2(%arg0: i32) -> (i32, i32) {
    %c0_i32 = arith.constant 0 : i32
    %c0_i32_0 = arith.constant 0 : i32
    %c0_i32_1 = arith.constant 0 : i32
    return %c0_i32, %c0_i32_0 : i32, i32
  }
  func.func @transform_3(%arg0: i32) -> (i32, i32) {
    %c0_i32 = arith.constant 0 : i32
    %c0_i32_0 = arith.constant 0 : i32
    %c0_i32_1 = arith.constant 0 : i32
    return %c0_i32, %c0_i32_0 : i32, i32
  }
}

</mosaic_0001>

<llo_original>
// kernel: _lambda_.1
$region0: #{_lambda_.1}
  #allocation0 [shape = 'u32[]', space=smem, size = 0x4, offset = 0x4, fixed_abs, tag = 'smem constant byte address 0x4 - core index']
  #allocation1 [shape = 'u32[72,128]{1,0:T(1,128)}', space=vmem, size = 0x9000, scoped, tag = 'internal scratch']
  %s0 = inlined_call_operand.vmem [shape: f32[16,1], index: 0, kind: input, shape index: {}]
  %s1 = inlined_call_operand.vmem [shape: f32[16,4], index: 1, kind: input, shape index: {}]
  %s2 = inlined_call_operand.hbm [shape: f32[400,128], index: 2, kind: input, shape index: {}]
  %s3 = inlined_call_operand.vmem [shape: f32[16,4], index: 3, kind: output, shape index: {}]
  %s4 = sld [smem:[#allocation0]]
  $region26: #{_lambda_.1} parent=0
    _
  %s6 = ssub.s32 1, %s4
  %s7 = scalar_select 0, %s6, %s4
  $region1: #{_lambda_.1} parent=0
    #allocation2 [shape = 'u8[204800]{0}', space=vmem, size = 0x32000, scoped, tag = 'input window, operand 2, single buffered']
    #allocation3 [shape = 's32[1]{0}', space=sflag, size = 0x4, scoped, tag = 'scoped memory for _lambda_.1']
    %8 = vsyncpa [#allocation3], 0
    // Predicated region
    $region2: #{_lambda_.1} parent=1 // pred_check
      _
    $region3: #{_lambda_.1} parent=1 // pred_check_branch
      %10 = sbr.rel (0) target = $region5
    $region4: #{_lambda_.1} parent=1 // pred_region
      _
    $region5: #{_lambda_.1} parent=1 // pred_fallthru
      _
    // Predicated region
    $region6: #{_lambda_.1} parent=1 // pred_check
      _
    $region7: #{_lambda_.1} parent=1 // pred_check_branch
      %12 = sbr.rel (0) target = $region9
    $region8: #{_lambda_.1} parent=1 // pred_region
      _
    $region9: #{_lambda_.1} parent=1 // pred_fallthru
      _
    // Predicated region
    $region10: #{_lambda_.1} parent=1 // pred_check
      _
    $region11: #{_lambda_.1} parent=1 // pred_check_branch
      %14 = sbr.rel (0) target = $region13
    $region12: #{_lambda_.1} parent=1 // pred_region
      %16 = vsyncadd [#allocation3], 0
      %s17 = sshll.u32 %s2, 4
      %s18 = int_to_ptr.hbm [resolvable:$true] %s17
      %s19 = sshll.u32 [#allocation2], 4
      %s20 = int_to_ptr.vmem [resolvable:$true] %s19
      %25 = dma.hbm_to_vmem [thread:$0]  %s18, 6400, %s20, [#allocation3], 128, 128, 8
    $region13: #{_lambda_.1} parent=1 // pred_fallthru
      _
    // Predicated region
    $region14: #{_lambda_.1} parent=1 // pred_check
      _
    $region15: #{_lambda_.1} parent=1 // pred_check_branch
      %27 = sbr.rel (0) target = $region17
    $region16: #{_lambda_.1} parent=1 // pred_region
      %29 = dma.done [#allocation3], 6400
    $region17: #{_lambda_.1} parent=1 // pred_fallthru
      _
    %v31 = vld [vmem:[#allocation2 + $0x10] sm:$0x1]
    %v32 = vld [vmem:[#allocation2 + $0x11] sm:$0x1]
    %v33 = vld [vmem:[#allocation2] sm:$0xff]
    %v34 = vld [vmem:[#allocation2 + $0x8] sm:$0xff]
    %v35 = vld [vmem:[#allocation2 + $0x18] sm:$0xf]
    %v36 = vld [vmem:[%s0] sm:$0xff]
    %v37 = vld [vmem:[%s0 + $0x8] sm:$0xff]
    %39 = vset.pattern.permute.xlu0 0
    %40 = vperm.xlu0 %39, %v36
    %v41 = vpop.permute.xlu0 %40
    %44 = vset.pattern.permute.xlu0 0
    %45 = vperm.xlu0 %44, %v37
    %v46 = vpop.permute.xlu0 %45
    %v48 = vperm.slane %v31, 0
    %v49 = vmul.f32 %v41, %v48
    %v50 = vmul.f32 %v46, %v48
    %v51 = vperm.slane %v32, 0
    %v52 = vadd.f32 %v49, %v51
    %v53 = vadd.f32 %v50, %v51
    %v54 = vld [vmem:[%s1] sm:$0xff]
    %v55 = vld [vmem:[%s1 + $0x8] sm:$0xff]
    %vm56 = vcmask 31744
    %v58 = vsel %vm56, %v54, 0
    %v61 = vsel %vm56, %v55, 0
    %vm63 = vcmask 1043456
    %v65 = vsel %vm63, %v35, 0
    %67 = vmatpush.msra.mxu0 0.0
    %68 = vmatpush.msra.mxu0 0.0
    %69 = vmatpush.msra.mxu0 0.0
    %70 = vmatpush.msra.mxu0 0.0
    %71 = vmatpush.msra.mxu0 0.0
    %72 = vmatpush.msra.mxu0 0.0
    %73 = vmatpush.msra.mxu0 0.0
    %74 = vmatpush.msra.mxu0 0.0
    %75 = vmatpush.msra.mxu0 0.0
    %76 = vmatpush.msra.mxu0 0.0
    %77 = vmatpush.msra.mxu0 0.0
    %78 = vmatpush.msra.mxu0 0.0
    %79 = vmatpush.msra.mxu0 0.0
    %80 = vmatpush.msra.mxu0 0.0
    %81 = vmatpush.msra.mxu0 0.0
    %82 = vmatpush.msra.mxu0 %v65
    %83 = vmatmul.f32.gmra.mxu0 %v58
    %v84 = vpop.f32.mrf.mxu0
    %v85 = vadd.f32 %v33, %v84
    %86 = vmatmul.f32.gmra.mxu0 %v61
    %v87 = vpop.f32.mrf.mxu0
    %v88 = vadd.f32 %v34, %v87
    %89 = vdwg.mxu0
    %v90 = vlaneseq
    %v91 = vshrl.u32 %v90, 7
    %v92 = vadd.s32 %v91, 8
    %v93 = vadd.s32 %v91, 16
    %v94 = vadd.s32 %v91, 24
    %v95 = vlaneseq
    %v96 = vand.u32 %v95, 127
    %vm97 = vcmp.lt.s32.totalorder %v96, 10
    %vm98 = vcmp.ge.s32.totalorder %v96, 16
    %vm99 = vmor %vm97, %vm98
    %vm100 = vcmp.lt.s32.totalorder %v91, 0
    %v101 = vsub.s32 0, %v91
    %v102 = vsel %vm100, %v101, %v91
    %v103 = vshrl.u32 %v102, 1
    %v104 = vand.u32 %v102, 1
    %v105 = vsub.s32 0, %v104
    %v106 = vsel %vm100, %v105, %v104
    %vm107 = vcmp.lt.s32.totalorder %v92, 0
    %v108 = vsub.s32 0, %v92
    %v109 = vsel %vm107, %v108, %v92
    %v110 = vshrl.u32 %v109, 1
    %v111 = vand.u32 %v109, 1
    %v112 = vsub.s32 0, %v111
    %v113 = vsel %vm107, %v112, %v111
    %vm114 = vcmp.lt.s32.totalorder %v93, 0
    %v115 = vsub.s32 0, %v93
    %v116 = vsel %vm114, %v115, %v93
    %v117 = vshrl.u32 %v116, 1
    %v118 = vand.u32 %v116, 1
    %v119 = vsub.s32 0, %v118
    %v120 = vsel %vm114, %v119, %v118
    %vm121 = vcmp.lt.s32.totalorder %v94, 0
    %v122 = vsub.s32 0, %v94
    %v123 = vsel %vm121, %v122, %v94
    %v124 = vshrl.u32 %v123, 1
    %v125 = vand.u32 %v123, 1
    %v126 = vsub.s32 0, %v125
    %v127 = vsel %vm121, %v126, %v125
    %vm128 = vcmp.ne.s32.totalorder %v106, 0
    %vm129 = vcmp.ne.s32.totalorder %v113, 0
    %vm130 = vcmp.ne.s32.totalorder %v120, 0
    %vm131 = vcmp.ne.s32.totalorder %v127, 0
    %vm132 = vcmp.lt.s32.totalorder %v106, 0
    %vm133 = vcmp.lt.s32.totalorder %v113, 0
    %vm134 = vcmp.lt.s32.totalorder %v120, 0
    %vm135 = vcmp.lt.s32.totalorder %v127, 0
    %vm136 = vmand %vm132, %vm128
    %vm137 = vmand %vm133, %vm129
    %vm138 = vmand %vm134, %vm130
    %vm139 = vmand %vm135, %vm131
    %v140 = vadd.s32 %v106, 2
    %v141 = vadd.s32 %v113, 2
    %v142 = vadd.s32 %v120, 2
    %v143 = vadd.s32 %v127, 2
    %v144 = vsel %vm136, %v140, %v106
    %v145 = vsel %vm137, %v141, %v113
    %v146 = vsel %vm138, %v142, %v120
    %v147 = vsel %vm139, %v143, %v127
    %vm148 = vcmp.lt.s32.totalorder %v96, 0
    %v149 = vsub.s32 0, %v96
    %v150 = vsel %vm148, %v149, %v96
    %v151 = vshrl.u32 %v150, 1
    %v152 = vand.u32 %v150, 1
    %v153 = vsub.s32 0, %v152
    %v154 = vsel %vm148, %v153, %v152
    %vm155 = vcmp.ne.s32.totalorder %v154, 0
    %vm156 = vcmp.lt.s32.totalorder %v154, 0
    %vm157 = vmand %vm156, %vm155
    %v158 = vadd.s32 %v154, 2
    %v159 = vsel %vm157, %v158, %v154
    %vm160 = vcmp.eq.s32.totalorder %v144, %v159
    %vm161 = vcmp.eq.s32.totalorder %v145, %v159
    %vm162 = vcmp.eq.s32.totalorder %v146, %v159
    %vm163 = vcmp.eq.s32.totalorder %v147, %v159
    %vm164 = vmand %vm160, %vm99
    %vm165 = vmand %vm161, %vm99
    %vm166 = vmand %vm162, %vm99
    %vm167 = vmand %vm163, %vm99
    %v168 = vsel %vm164, 0.0, -1e+30
    %v169 = vsel %vm165, 0.0, -1e+30
    %v170 = vsel %vm166, 0.0, -1e+30
    %v171 = vsel %vm167, 0.0, -1e+30
    %v172 = vld [vmem:[#allocation2 + $0x40] sm:$0xff]
    %v173 = vld [vmem:[#allocation2 + $0x48] sm:$0xff]
    %v174 = vld [vmem:[#allocation2 + $0x50] sm:$0xff]
    %v175 = vld [vmem:[#allocation2 + $0x58] sm:$0xff]
    %v176 = vpack.c.bf16 %v173, %v172
    %v177 = vpack.c.bf16 %v175, %v174
    %v178 = vld [vmem:[#allocation2 + $0x60] sm:$0x1]
    %v179 = vld [vmem:[#allocation2 + $0x61] sm:$0x1]
    %v180 = vld [vmem:[#allocation2 + $0x62] sm:$0x1]
    %v181 = vld [vmem:[#allocation2 + $0x63] sm:$0x1]
    %v182 = vld [vmem:[#allocation2 + $0x64] sm:$0x1]
    %v183 = vld [vmem:[#allocation2 + $0x65] sm:$0x1]
    %v184 = vld [vmem:[#allocation2 + $0x66] sm:$0x1]
    %v185 = vld [vmem:[#allocation2 + $0x67] sm:$0x1]
    %v186 = vld [vmem:[#allocation2 + $0x68] sm:$0xff]
    %v187 = vld [vmem:[#allocation2 + $0x70] sm:$0xff]
    %v188 = vld [vmem:[#allocation2 + $0x78] sm:$0xff]
    %v189 = vld [vmem:[#allocation2 + $0x80] sm:$0xff]
    %v190 = vpack.c.bf16 %v187, %v186
    %v191 = vpack.c.bf16 %v189, %v188
    %v192 = vld [vmem:[#allocation2 + $0x88] sm:$0xff]
    %v193 = vld [vmem:[#allocation2 + $0x90] sm:$0xff]
    %v194 = vld [vmem:[#allocation2 + $0x98] sm:$0xff]
    %v195 = vld [vmem:[#allocation2 + $0xa0] sm:$0xff]
    %v196 = vpack.c.bf16 %v193, %v192
    %v197 = vpack.c.bf16 %v195, %v194
    %v198 = vld [vmem:[#allocation2 + $0xa8] sm:$0xff]
    %v199 = vld [vmem:[#allocation2 + $0xb0] sm:$0xff]
    %v200 = vld [vmem:[#allocation2 + $0xb8] sm:$0xff]
    %v201 = vld [vmem:[#allocation2 + $0xc0] sm:$0xff]
    %v202 = vld [vmem:[#allocation2 + $0xc8] sm:$0xff]
    %v203 = vld [vmem:[#allocation2 + $0xd0] sm:$0xff]
    %v204 = vld [vmem:[#allocation2 + $0xd8] sm:$0xff]
    %v205 = vld [vmem:[#allocation2 + $0xe0] sm:$0xff]
    %v206 = vpack.c.bf16 %v199, %v198
    %v207 = vpack.c.bf16 %v201, %v200
    %v208 = vpack.c.bf16 %v203, %v202
    %v209 = vpack.c.bf16 %v205, %v204
    %v210 = vpack.c.bf16 %v53, %v52
    %v211 = vpack.c.bf16 %v88, %v85
    %v212 = vperm.slane %v178, 0
    %vm213 = vcmask 261120
    %v215 = vsel %vm213, %v210, 0
    %v218 = vsel %vm213, %v211, 0
    %220 = vmatpush.bf16.msra.mxu0 0
    %221 = vmatpush.bf16.msra.mxu0 0
    %222 = vmatpush.bf16.msra.mxu0 0
    %223 = vmatpush.bf16.msra.mxu0 0
    %224 = vmatpush.bf16.msra.mxu0 0
    %225 = vmatpush.bf16.msra.mxu0 0
    %226 = vmatpush.bf16.msra.mxu0 %v177
    %227 = vmatpush.bf16.msra.mxu0 %v176
    %228 = vmatmul.bf16.gmra.mxu0 %v215
    %v229 = vpop.f32.mrf.mxu0
    %v230 = vadd.f32 %v212, %v229
    %v231 = vpop.f32.mrf.mxu0
    %v232 = vadd.f32 %v212, %v231
    %233 = vmatmul.bf16.gmra.mxu0 %v218
    %v234 = vpop.f32.mrf.mxu0
    %v235 = vadd.f32 %v212, %v234
    %v236 = vpop.f32.mrf.mxu0
    %v237 = vadd.f32 %v212, %v236
    %238 = vdwg.mxu0
    %v239 = vpack.c.bf16 %v232, %v230
    %v240 = vpack.c.bf16 %v237, %v235
    %243 = vrot.lane.b32.xlu0 %v239, 96
    %v244 = vpop.permute.xlu0 %243
    %245 = vrot.lane.b32.xlu0 %v240, 96
    %v246 = vpop.permute.xlu0 %245
    %vm247 = vcmask 64512
    %v249 = vsel %vm247, %v239, 0
    %v252 = vsel %vm247, %v240, 0
    %v255 = vsel %vm247, %v244, 0
    %v258 = vsel %vm247, %v246, 0
    %260 = vmatpush.bf16.xpose.msra.mxu0 0
    %261 = vmatpush.bf16.xpose.msra.mxu0 0
    %262 = vmatpush.bf16.xpose.msra.mxu0 0
    %263 = vmatpush.bf16.xpose.msra.mxu0 0
    %264 = vmatpush.bf16.xpose.msra.mxu0 0
    %265 = vmatpush.bf16.xpose.msra.mxu0 0
    %266 = vmatpush.bf16.xpose.msra.mxu0 %v258
    %267 = vmatpush.bf16.xpose.msra.mxu0 %v255
    %268 = vmatmul.bf16.gmra.mxu0 %v249
    %v269 = vpop.f32.mrf.mxu0
    %v270 = vadd.f32 %v168, %v269
    %v271 = vpop.f32.mrf.mxu0
    %v272 = vadd.f32 %v169, %v271
    %273 = vmatmul.bf16.gmra.mxu0 %v252
    %v274 = vpop.f32.mrf.mxu0
    %v275 = vadd.f32 %v170, %v274
    %v276 = vpop.f32.mrf.mxu0
    %v277 = vadd.f32 %v171, %v276
    %278 = vdwg.mxu0
    %v279 = vsel %vm213, %v270, -inf
    %280 = vmax.xlane.f32.xlu0 %v279
    %v281 = vpop.xlane.xlu0 %280
    %v282 = vsel %vm213, %v272, -inf
    %283 = vmax.xlane.f32.xlu0 %v282
    %v284 = vpop.xlane.xlu0 %283
    %v285 = vsel %vm213, %v275, -inf
    %286 = vmax.xlane.f32.xlu0 %v285
    %v287 = vpop.xlane.xlu0 %286
    %v288 = vsel %vm213, %v277, -inf
    %289 = vmax.xlane.f32.xlu0 %v288
    %v290 = vpop.xlane.xlu0 %289
    %v291 = vsub.f32 %v270, %v281
    %v292 = vsub.f32 %v272, %v284
    %v293 = vsub.f32 %v275, %v287
    %v294 = vsub.f32 %v277, %v290
    %v295 = vmul.f32 %v291, 1.442695
    %v296 = vpow.pop %v295
    %v297 = vmul.f32 %v292, 1.442695
    %v298 = vpow.pop %v297
    %v299 = vmul.f32 %v293, 1.442695
    %v300 = vpow.pop %v299
    %v301 = vmul.f32 %v294, 1.442695
    %v302 = vpow.pop %v301
    %v303 = vsel %vm213, %v296, 0.0
    %304 = vadd.xlane.f32.xlu0 %v303
    %v305 = vpop.xlane.xlu0 %304
    %v306 = vsel %vm213, %v298, 0.0
    %307 = vadd.xlane.f32.xlu0 %v306
    %v308 = vpop.xlane.xlu0 %307
    %v309 = vsel %vm213, %v300, 0.0
    %310 = vadd.xlane.f32.xlu0 %v309
    %v311 = vpop.xlane.xlu0 %310
    %v312 = vsel %vm213, %v302, 0.0
    %313 = vadd.xlane.f32.xlu0 %v312
    %v314 = vpop.xlane.xlu0 %313
    %v315 = vrcp.pop %v305
    %v316 = vrcp.pop %v308
    %v317 = vrcp.pop %v311
    %v318 = vrcp.pop %v314
    %v319 = vmul.f32 %v296, %v315
    %v320 = vmul.f32 %v298, %v316
    %v321 = vmul.f32 %v300, %v317
    %v322 = vmul.f32 %v302, %v318
    %v323 = vpack.c.bf16 %v320, %v319
    %v324 = vpack.c.bf16 %v322, %v321
    %325 = vrot.lane.b32.xlu0 %v239, 64
    %v326 = vpop.permute.xlu0 %325
    %327 = vrot.lane.b32.xlu0 %v240, 64
    %v328 = vpop.permute.xlu0 %327
    %v332 = vsel %vm213, %v323, 0
    %v335 = vsel %vm213, %v324, 0
    %337 = vmatpush.bf16.msra.mxu0 0
    %338 = vmatpush.bf16.msra.mxu0 0
    %339 = vmatpush.bf16.msra.mxu0 0
    %340 = vmatpush.bf16.msra.mxu0 0
    %341 = vmatpush.bf16.msra.mxu0 0
    %342 = vmatpush.bf16.msra.mxu0 0
    %343 = vmatpush.bf16.msra.mxu0 %v328
    %344 = vmatpush.bf16.msra.mxu0 %v326
    %345 = vmatmul.bf16.gmra.mxu0 %v332
    %v346 = vpop.f32.mrf.mxu0
    %v347 = vadd.f32 0.0, %v346
    %v348 = vpop.f32.mrf.mxu0
    %v349 = vadd.f32 0.0, %v348
    %350 = vmatmul.bf16.gmra.mxu0 %v335
    %v351 = vpop.f32.mrf.mxu0
    %v352 = vadd.f32 0.0, %v351
    %v353 = vpop.f32.mrf.mxu0
    %v354 = vadd.f32 0.0, %v353
    %355 = vdwg.mxu0
    %356 = vrot.lane.b32.xlu0 %v239, 120
    %v357 = vpop.permute.xlu0 %356
    %358 = vrot.lane.b32.xlu0 %v240, 120
    %v359 = vpop.permute.xlu0 %358
    %360 = vrot.lane.b32.xlu0 %v239, 88
    %v361 = vpop.permute.xlu0 %360
    %362 = vrot.lane.b32.xlu0 %v240, 88
    %v363 = vpop.permute.xlu0 %362
    %v365 = vsel %vm247, %v357, 0
    %v368 = vsel %vm247, %v359, 0
    %v371 = vsel %vm247, %v361, 0
    %v374 = vsel %vm247, %v363, 0
    %376 = vmatpush.bf16.xpose.msra.mxu0 0
    %377 = vmatpush.bf16.xpose.msra.mxu0 0
    %378 = vmatpush.bf16.xpose.msra.mxu0 0
    %379 = vmatpush.bf16.xpose.msra.mxu0 0
    %380 = vmatpush.bf16.xpose.msra.mxu0 0
    %381 = vmatpush.bf16.xpose.msra.mxu0 0
    %382 = vmatpush.bf16.xpose.msra.mxu0 %v374
    %383 = vmatpush.bf16.xpose.msra.mxu0 %v371
    %384 = vmatmul.bf16.gmra.mxu0 %v365
    %v385 = vpop.f32.mrf.mxu0
    %v386 = vadd.f32 %v168, %v385
    %v387 = vpop.f32.mrf.mxu0
    %v388 = vadd.f32 %v169, %v387
    %389 = vmatmul.bf16.gmra.mxu0 %v368
    %v390 = vpop.f32.mrf.mxu0
    %v391 = vadd.f32 %v170, %v390
    %v392 = vpop.f32.mrf.mxu0
    %v393 = vadd.f32 %v171, %v392
    %394 = vdwg.mxu0
    %v395 = vsel %vm213, %v386, -inf
    %396 = vmax.xlane.f32.xlu0 %v395
    %v397 = vpop.xlane.xlu0 %396
    %v398 = vsel %vm213, %v388, -inf
    %399 = vmax.xlane.f32.xlu0 %v398
    %v400 = vpop.xlane.xlu0 %399
    %v401 = vsel %vm213, %v391, -inf
    %402 = vmax.xlane.f32.xlu0 %v401
    %v403 = vpop.xlane.xlu0 %402
    %v404 = vsel %vm213, %v393, -inf
    %405 = vmax.xlane.f32.xlu0 %v404
    %v406 = vpop.xlane.xlu0 %405
    %v407 = vsub.f32 %v386, %v397
    %v408 = vsub.f32 %v388, %v400
    %v409 = vsub.f32 %v391, %v403
    %v410 = vsub.f32 %v393, %v406
    %v411 = vmul.f32 %v407, 1.442695
    %v412 = vpow.pop %v411
    %v413 = vmul.f32 %v408, 1.442695
    %v414 = vpow.pop %v413
    %v415 = vmul.f32 %v409, 1.442695
    %v416 = vpow.pop %v415
    %v417 = vmul.f32 %v410, 1.442695
    %v418 = vpow.pop %v417
    %v419 = vsel %vm213, %v412, 0.0
    %420 = vadd.xlane.f32.xlu0 %v419
    %v421 = vpop.xlane.xlu0 %420
    %v422 = vsel %vm213, %v414, 0.0
    %423 = vadd.xlane.f32.xlu0 %v422
    %v424 = vpop.xlane.xlu0 %423
    %v425 = vsel %vm213, %v416, 0.0
    %426 = vadd.xlane.f32.xlu0 %v425
    %v427 = vpop.xlane.xlu0 %426
    %v428 = vsel %vm213, %v418, 0.0
    %429 = vadd.xlane.f32.xlu0 %v428
    %v430 = vpop.xlane.xlu0 %429
    %v431 = vrcp.pop %v421
    %v432 = vrcp.pop %v424
    %v433 = vrcp.pop %v427
    %v434 = vrcp.pop %v430
    %v435 = vmul.f32 %v412, %v431
    %v436 = vmul.f32 %v414, %v432
    %v437 = vmul.f32 %v416, %v433
    %v438 = vmul.f32 %v418, %v434
    %v439 = vpack.c.bf16 %v436, %v435
    %v440 = vpack.c.bf16 %v438, %v437
    %441 = vrot.lane.b32.xlu0 %v239, 56
    %v442 = vpop.permute.xlu0 %441
    %443 = vrot.lane.b32.xlu0 %v240, 56
    %v444 = vpop.permute.xlu0 %443
    %v448 = vsel %vm213, %v439, 0
    %v451 = vsel %vm213, %v440, 0
    %453 = vmatpush.bf16.msra.mxu0 0
    %454 = vmatpush.bf16.msra.mxu0 0
    %455 = vmatpush.bf16.msra.mxu0 0
    %456 = vmatpush.bf16.msra.mxu0 0
    %457 = vmatpush.bf16.msra.mxu0 0
    %458 = vmatpush.bf16.msra.mxu0 0
    %459 = vmatpush.bf16.msra.mxu0 %v444
    %460 = vmatpush.bf16.msra.mxu0 %v442
    %461 = vmatmul.bf16.gmra.mxu0 %v448
    %v462 = vpop.f32.mrf.mxu0
    %v463 = vadd.f32 0.0, %v462
    %v464 = vpop.f32.mrf.mxu0
    %v465 = vadd.f32 0.0, %v464
    %466 = vmatmul.bf16.gmra.mxu0 %v451
    %v467 = vpop.f32.mrf.mxu0
    %v468 = vadd.f32 0.0, %v467
    %v469 = vpop.f32.mrf.mxu0
    %v470 = vadd.f32 0.0, %v469
    %471 = vdwg.mxu0
    %472 = vrot.lane.b32.xlu0 %v239, 112
    %v473 = vpop.permute.xlu0 %472
    %474 = vrot.lane.b32.xlu0 %v240, 112
    %v475 = vpop.permute.xlu0 %474
    %476 = vrot.lane.b32.xlu0 %v239, 80
    %v477 = vpop.permute.xlu0 %476
    %478 = vrot.lane.b32.xlu0 %v240, 80
    %v479 = vpop.permute.xlu0 %478
    %v481 = vsel %vm247, %v473, 0
    %v484 = vsel %vm247, %v475, 0
    %v487 = vsel %vm247, %v477, 0
    %v490 = vsel %vm247, %v479, 0
    %492 = vmatpush.bf16.xpose.msra.mxu0 0
    %493 = vmatpush.bf16.xpose.msra.mxu0 0
    %494 = vmatpush.bf16.xpose.msra.mxu0 0
    %495 = vmatpush.bf16.xpose.msra.mxu0 0
    %496 = vmatpush.bf16.xpose.msra.mxu0 0
    %497 = vmatpush.bf16.xpose.msra.mxu0 0
    %498 = vmatpush.bf16.xpose.msra.mxu0 %v490
    %499 = vmatpush.bf16.xpose.msra.mxu0 %v487
    %500 = vmatmul.bf16.gmra.mxu0 %v481
    %v501 = vpop.f32.mrf.mxu0
    %v502 = vadd.f32 %v168, %v501
    %v503 = vpop.f32.mrf.mxu0
    %v504 = vadd.f32 %v169, %v503
    %505 = vmatmul.bf16.gmra.mxu0 %v484
    %v506 = vpop.f32.mrf.mxu0
    %v507 = vadd.f32 %v170, %v506
    %v508 = vpop.f32.mrf.mxu0
    %v509 = vadd.f32 %v171, %v508
    %510 = vdwg.mxu0
    %v511 = vsel %vm213, %v502, -inf
    %512 = vmax.xlane.f32.xlu0 %v511
    %v513 = vpop.xlane.xlu0 %512
    %v514 = vsel %vm213, %v504, -inf
    %515 = vmax.xlane.f32.xlu0 %v514
    %v516 = vpop.xlane.xlu0 %515
    %v517 = vsel %vm213, %v507, -inf
    %518 = vmax.xlane.f32.xlu0 %v517
    %v519 = vpop.xlane.xlu0 %518
    %v520 = vsel %vm213, %v509, -inf
    %521 = vmax.xlane.f32.xlu0 %v520
    %v522 = vpop.xlane.xlu0 %521
    %v523 = vsub.f32 %v502, %v513
    %v524 = vsub.f32 %v504, %v516
    %v525 = vsub.f32 %v507, %v519
    %v526 = vsub.f32 %v509, %v522
    %v527 = vmul.f32 %v523, 1.442695
    %v528 = vpow.pop %v527
    %v529 = vmul.f32 %v524, 1.442695
    %v530 = vpow.pop %v529
    %v531 = vmul.f32 %v525, 1.442695
    %v532 = vpow.pop %v531
    %v533 = vmul.f32 %v526, 1.442695
    %v534 = vpow.pop %v533
    %v535 = vsel %vm213, %v528, 0.0
    %536 = vadd.xlane.f32.xlu0 %v535
    %v537 = vpop.xlane.xlu0 %536
    %v538 = vsel %vm213, %v530, 0.0
    %539 = vadd.xlane.f32.xlu0 %v538
    %v540 = vpop.xlane.xlu0 %539
    %v541 = vsel %vm213, %v532, 0.0
    %542 = vadd.xlane.f32.xlu0 %v541
    %v543 = vpop.xlane.xlu0 %542
    %v544 = vsel %vm213, %v534, 0.0
    %545 = vadd.xlane.f32.xlu0 %v544
    %v546 = vpop.xlane.xlu0 %545
    %v547 = vrcp.pop %v537
    %v548 = vrcp.pop %v540
    %v549 = vrcp.pop %v543
    %v550 = vrcp.pop %v546
    %v551 = vmul.f32 %v528, %v547
    %v552 = vmul.f32 %v530, %v548
    %v553 = vmul.f32 %v532, %v549
    %v554 = vmul.f32 %v534, %v550
    %v555 = vpack.c.bf16 %v552, %v551
    %v556 = vpack.c.bf16 %v554, %v553
    %557 = vrot.lane.b32.xlu0 %v239, 48
    %v558 = vpop.permute.xlu0 %557
    %559 = vrot.lane.b32.xlu0 %v240, 48
    %v560 = vpop.permute.xlu0 %559
    %v564 = vsel %vm213, %v555, 0
    %v567 = vsel %vm213, %v556, 0
    %569 = vmatpush.bf16.msra.mxu0 0
    %570 = vmatpush.bf16.msra.mxu0 0
    %571 = vmatpush.bf16.msra.mxu0 0
    %572 = vmatpush.bf16.msra.mxu0 0
    %573 = vmatpush.bf16.msra.mxu0 0
    %574 = vmatpush.bf16.msra.mxu0 0
    %575 = vmatpush.bf16.msra.mxu0 %v560
    %576 = vmatpush.bf16.msra.mxu0 %v558
    %577 = vmatmul.bf16.gmra.mxu0 %v564
    %v578 = vpop.f32.mrf.mxu0
    %v579 = vadd.f32 0.0, %v578
    %v580 = vpop.f32.mrf.mxu0
    %v581 = vadd.f32 0.0, %v580
    %582 = vmatmul.bf16.gmra.mxu0 %v567
    %v583 = vpop.f32.mrf.mxu0
    %v584 = vadd.f32 0.0, %v583
    %v585 = vpop.f32.mrf.mxu0
    %v586 = vadd.f32 0.0, %v585
    %587 = vdwg.mxu0
    %588 = vrot.lane.b32.xlu0 %v239, 104
    %v589 = vpop.permute.xlu0 %588
    %590 = vrot.lane.b32.xlu0 %v240, 104
    %v591 = vpop.permute.xlu0 %590
    %592 = vrot.lane.b32.xlu0 %v239, 72
    %v593 = vpop.permute.xlu0 %592
    %594 = vrot.lane.b32.xlu0 %v240, 72
    %v595 = vpop.permute.xlu0 %594
    %v597 = vsel %vm247, %v589, 0
    %v600 = vsel %vm247, %v591, 0
    %v603 = vsel %vm247, %v593, 0
    %v606 = vsel %vm247, %v595, 0
    %608 = vmatpush.bf16.xpose.msra.mxu0 0
    %609 = vmatpush.bf16.xpose.msra.mxu0 0
    %610 = vmatpush.bf16.xpose.msra.mxu0 0
    %611 = vmatpush.bf16.xpose.msra.mxu0 0
    %612 = vmatpush.bf16.xpose.msra.mxu0 0
    %613 = vmatpush.bf16.xpose.msra.mxu0 0
    %614 = vmatpush.bf16.xpose.msra.mxu0 %v606
    %615 = vmatpush.bf16.xpose.msra.mxu0 %v603
    %616 = vmatmul.bf16.gmra.mxu0 %v597
    %v617 = vpop.f32.mrf.mxu0
    %v618 = vadd.f32 %v168, %v617
    %v619 = vpop.f32.mrf.mxu0
    %v620 = vadd.f32 %v169, %v619
    %621 = vmatmul.bf16.gmra.mxu0 %v600
    %v622 = vpop.f32.mrf.mxu0
    %v623 = vadd.f32 %v170, %v622
    %v624 = vpop.f32.mrf.mxu0
    %v625 = vadd.f32 %v171, %v624
    %626 = vdwg.mxu0
    %v627 = vsel %vm213, %v618, -inf
    %628 = vmax.xlane.f32.xlu0 %v627
    %v629 = vpop.xlane.xlu0 %628
    %v630 = vsel %vm213, %v620, -inf
    %631 = vmax.xlane.f32.xlu0 %v630
    %v632 = vpop.xlane.xlu0 %631
    %v633 = vsel %vm213, %v623, -inf
    %634 = vmax.xlane.f32.xlu0 %v633
    %v635 = vpop.xlane.xlu0 %634
    %v636 = vsel %vm213, %v625, -inf
    %637 = vmax.xlane.f32.xlu0 %v636
    %v638 = vpop.xlane.xlu0 %637
    %v639 = vsub.f32 %v618, %v629
    %v640 = vsub.f32 %v620, %v632
    %v641 = vsub.f32 %v623, %v635
    %v642 = vsub.f32 %v625, %v638
    %v643 = vmul.f32 %v639, 1.442695
    %v644 = vpow.pop %v643
    %v645 = vmul.f32 %v640, 1.442695
    %v646 = vpow.pop %v645
    %v647 = vmul.f32 %v641, 1.442695
    %v648 = vpow.pop %v647
    %v649 = vmul.f32 %v642, 1.442695
    %v650 = vpow.pop %v649
    %v651 = vsel %vm213, %v644, 0.0
    %652 = vadd.xlane.f32.xlu0 %v651
    %v653 = vpop.xlane.xlu0 %652
    %v654 = vsel %vm213, %v646, 0.0
    %655 = vadd.xlane.f32.xlu0 %v654
    %v656 = vpop.xlane.xlu0 %655
    %v657 = vsel %vm213, %v648, 0.0
    %658 = vadd.xlane.f32.xlu0 %v657
    %v659 = vpop.xlane.xlu0 %658
    %v660 = vsel %vm213, %v650, 0.0
    %661 = vadd.xlane.f32.xlu0 %v660
    %v662 = vpop.xlane.xlu0 %661
    %v663 = vrcp.pop %v653
    %v664 = vrcp.pop %v656
    %v665 = vrcp.pop %v659
    %v666 = vrcp.pop %v662
    %v667 = vmul.f32 %v644, %v663
    %v668 = vmul.f32 %v646, %v664
    %v669 = vmul.f32 %v648, %v665
    %v670 = vmul.f32 %v650, %v666
    %v671 = vpack.c.bf16 %v668, %v667
    %v672 = vpack.c.bf16 %v670, %v669
    %673 = vrot.lane.b32.xlu0 %v239, 40
    %v674 = vpop.permute.xlu0 %673
    %675 = vrot.lane.b32.xlu0 %v240, 40
    %v676 = vpop.permute.xlu0 %675
    %v680 = vsel %vm213, %v671, 0
    %v683 = vsel %vm213, %v672, 0
    %685 = vmatpush.bf16.msra.mxu0 0
    %686 = vmatpush.bf16.msra.mxu0 0
    %687 = vmatpush.bf16.msra.mxu0 0
    %688 = vmatpush.bf16.msra.mxu0 0
    %689 = vmatpush.bf16.msra.mxu0 0
    %690 = vmatpush.bf16.msra.mxu0 0
    %691 = vmatpush.bf16.msra.mxu0 %v676
    %692 = vmatpush.bf16.msra.mxu0 %v674
    %693 = vmatmul.bf16.gmra.mxu0 %v680
    %v694 = vpop.f32.mrf.mxu0
    %v695 = vadd.f32 0.0, %v694
    %v696 = vpop.f32.mrf.mxu0
    %v697 = vadd.f32 0.0, %v696
    %698 = vmatmul.bf16.gmra.mxu0 %v683
    %v699 = vpop.f32.mrf.mxu0
    %v700 = vadd.f32 0.0, %v699
    %v701 = vpop.f32.mrf.mxu0
    %v702 = vadd.f32 0.0, %v701
    %703 = vdwg.mxu0
    %708 = vrot.lane.b32.xlu0 %v463, 8
    %v709 = vpop.permute.xlu0 %708
    %710 = vrot.lane.b32.xlu0 %v465, 8
    %v711 = vpop.permute.xlu0 %710
    %712 = vrot.lane.b32.xlu0 %v468, 8
    %v713 = vpop.permute.xlu0 %712
    %714 = vrot.lane.b32.xlu0 %v470, 8
    %v715 = vpop.permute.xlu0 %714
    %724 = vrot.lane.b32.xlu0 %v579, 16
    %v725 = vpop.permute.xlu0 %724
    %726 = vrot.lane.b32.xlu0 %v581, 16
    %v727 = vpop.permute.xlu0 %726
    %728 = vrot.lane.b32.xlu0 %v584, 16
    %v729 = vpop.permute.xlu0 %728
    %730 = vrot.lane.b32.xlu0 %v586, 16
    %v731 = vpop.permute.xlu0 %730
    %740 = vrot.lane.b32.xlu0 %v695, 24
    %v741 = vpop.permute.xlu0 %740
    %742 = vrot.lane.b32.xlu0 %v697, 24
    %v743 = vpop.permute.xlu0 %742
    %744 = vrot.lane.b32.xlu0 %v700, 24
    %v745 = vpop.permute.xlu0 %744
    %746 = vrot.lane.b32.xlu0 %v702, 24
    %v747 = vpop.permute.xlu0 %746
    %v752 = vsel %vm247, %v347, %v709
    %v753 = vsel %vm247, %v349, %v711
    %v754 = vsel %vm247, %v352, %v713
    %v755 = vsel %vm247, %v354, %v715
    %vm756 = vcmask 130048
    %v757 = vsel %vm756, %v752, %v725
    %v758 = vsel %vm756, %v753, %v727
    %v759 = vsel %vm756, %v754, %v729
    %v760 = vsel %vm756, %v755, %v731
    %vm761 = vcmask 195584
    %v762 = vsel %vm761, %v757, %v741
    %v763 = vsel %vm761, %v758, %v743
    %v764 = vsel %vm761, %v759, %v745
    %v765 = vsel %vm761, %v760, %v747
    %v766 = vpack.c.bf16 %v763, %v762
    %v767 = vpack.c.bf16 %v765, %v764
    %v768 = vperm.slane %v179, 0
    %v770 = vsel %vm213, %v766, 0
    %v773 = vsel %vm213, %v767, 0
    %775 = vmatpush.bf16.msra.mxu0 0
    %776 = vmatpush.bf16.msra.mxu0 0
    %777 = vmatpush.bf16.msra.mxu0 0
    %778 = vmatpush.bf16.msra.mxu0 0
    %779 = vmatpush.bf16.msra.mxu0 0
    %780 = vmatpush.bf16.msra.mxu0 0
    %781 = vmatpush.bf16.msra.mxu0 %v191
    %782 = vmatpush.bf16.msra.mxu0 %v190
    %783 = vmatmul.bf16.gmra.mxu0 %v770
    %v784 = vpop.f32.mrf.mxu0
    %v785 = vadd.f32 %v768, %v784
    %v786 = vpop.f32.mrf.mxu0
    %v787 = vadd.f32 %v768, %v786
    %788 = vmatmul.bf16.gmra.mxu0 %v773
    %v789 = vpop.f32.mrf.mxu0
    %v790 = vadd.f32 %v768, %v789
    %v791 = vpop.f32.mrf.mxu0
    %v792 = vadd.f32 %v768, %v791
    %793 = vdwg.mxu0
    %v794 = vadd.f32 %v52, %v785
    %v795 = vadd.f32 %v53, %v787
    %v796 = vadd.f32 %v85, %v790
    %v797 = vadd.f32 %v88, %v792
    %v798 = vsel %vm213, %v794, 0.0
    %799 = vadd.xlane.f32.xlu0 %v798
    %v800 = vpop.xlane.xlu0 %799
    %v801 = vsel %vm213, %v795, 0.0
    %802 = vadd.xlane.f32.xlu0 %v801
    %v803 = vpop.xlane.xlu0 %802
    %v804 = vsel %vm213, %v796, 0.0
    %805 = vadd.xlane.f32.xlu0 %v804
    %v806 = vpop.xlane.xlu0 %805
    %v807 = vsel %vm213, %v797, 0.0
    %808 = vadd.xlane.f32.xlu0 %v807
    %v809 = vpop.xlane.xlu0 %808
    %v810 = vrcp.pop 32.0
    %v811 = vmul.f32 32.0, %v810
    %v812 = vsub.f32 1.0, %v811
    %v813 = vmul.f32 %v810, %v812
    %v814 = vadd.f32 %v810, %v813
    %vm815 = vweird.f32 %v810
    %v816 = vsel %vm815, %v810, %v814
    %v817 = vmul.f32 %v800, %v816
    %v818 = vmul.f32 %v803, %v816
    %v819 = vmul.f32 %v806, %v816
    %v820 = vmul.f32 %v809, %v816
    %v821 = vsub.f32 %v794, %v817
    %v822 = vsub.f32 %v795, %v818
    %v823 = vsub.f32 %v796, %v819
    %v824 = vsub.f32 %v797, %v820
    %v825 = vmul.f32 %v821, %v821
    %v826 = vmul.f32 %v822, %v822
    %v827 = vmul.f32 %v823, %v823
    %v828 = vmul.f32 %v824, %v824
    %v829 = vsel %vm213, %v825, 0.0
    %830 = vadd.xlane.f32.xlu0 %v829
    %v831 = vpop.xlane.xlu0 %830
    %v832 = vsel %vm213, %v826, 0.0
    %833 = vadd.xlane.f32.xlu0 %v832
    %v834 = vpop.xlane.xlu0 %833
    %v835 = vsel %vm213, %v827, 0.0
    %836 = vadd.xlane.f32.xlu0 %v835
    %v837 = vpop.xlane.xlu0 %836
    %v838 = vsel %vm213, %v828, 0.0
    %839 = vadd.xlane.f32.xlu0 %v838
    %v840 = vpop.xlane.xlu0 %839
    %v841 = vmul.f32 %v831, %v816
    %v842 = vmul.f32 %v834, %v816
    %v843 = vmul.f32 %v837, %v816
    %v844 = vmul.f32 %v840, %v816
    %v845 = vadd.f32 %v841, 1e-05
    %v846 = vadd.f32 %v842, 1e-05
    %v847 = vadd.f32 %v843, 1e-05
    %v848 = vadd.f32 %v844, 1e-05
    %v849 = vrsqrt.pop %v845
    %v850 = vmul.f32 %v849, %v845
    %v851 = vmul.f32 %v850, %v849
    %v852 = vmul.f32 0.5, %v851
    %v853 = vsub.f32 1.5, %v852
    %v854 = vmul.f32 %v849, %v853
    %vm855 = vweird.f32 %v845
    %vm856 = vweird.f32 %v849
    %vm857 = vmor %vm855, %vm856
    %v858 = vsel %vm857, %v849, %v854
    %v859 = vrsqrt.pop %v846
    %v860 = vmul.f32 %v859, %v846
    %v861 = vmul.f32 %v860, %v859
    %v862 = vmul.f32 0.5, %v861
    %v863 = vsub.f32 1.5, %v862
    %v864 = vmul.f32 %v859, %v863
    %vm865 = vweird.f32 %v846
    %vm866 = vweird.f32 %v859
    %vm867 = vmor %vm865, %vm866
    %v868 = vsel %vm867, %v859, %v864
    %v869 = vrsqrt.pop %v847
    %v870 = vmul.f32 %v869, %v847
    %v871 = vmul.f32 %v870, %v869
    %v872 = vmul.f32 0.5, %v871
    %v873 = vsub.f32 1.5, %v872
    %v874 = vmul.f32 %v869, %v873
    %vm875 = vweird.f32 %v847
    %vm876 = vweird.f32 %v869
    %vm877 = vmor %vm875, %vm876
    %v878 = vsel %vm877, %v869, %v874
    %v879 = vrsqrt.pop %v848
    %v880 = vmul.f32 %v879, %v848
    %v881 = vmul.f32 %v880, %v879
    %v882 = vmul.f32 0.5, %v881
    %v883 = vsub.f32 1.5, %v882
    %v884 = vmul.f32 %v879, %v883
    %vm885 = vweird.f32 %v848
    %vm886 = vweird.f32 %v879
    %vm887 = vmor %vm885, %vm886
    %v888 = vsel %vm887, %v879, %v884
    %v889 = vmul.f32 %v821, %v858
    %v890 = vmul.f32 %v822, %v868
    %v891 = vmul.f32 %v823, %v878
    %v892 = vmul.f32 %v824, %v888
    %v893 = vperm.slane %v180, 0
    %v894 = vmul.f32 %v889, %v893
    %v895 = vmul.f32 %v890, %v893
    %v896 = vmul.f32 %v891, %v893
    %v897 = vmul.f32 %v892, %v893
    %v898 = vperm.slane %v181, 0
    %v899 = vadd.f32 %v894, %v898
    %v900 = vadd.f32 %v895, %v898
    %v901 = vadd.f32 %v896, %v898
    %v902 = vadd.f32 %v897, %v898
    %v903 = vpack.c.bf16 %v900, %v899
    %v904 = vpack.c.bf16 %v902, %v901
    %v905 = vperm.slane %v185, 0
    %v907 = vsel %vm213, %v903, 0
    %v910 = vsel %vm213, %v904, 0
    %912 = vmatpush.bf16.msra.mxu0 0
    %913 = vmatpush.bf16.msra.mxu0 0
    %914 = vmatpush.bf16.msra.mxu0 0
    %915 = vmatpush.bf16.msra.mxu0 0
    %916 = vmatpush.bf16.msra.mxu0 0
    %917 = vmatpush.bf16.msra.mxu0 0
    %918 = vmatpush.bf16.msra.mxu0 %v197
    %919 = vmatpush.bf16.msra.mxu0 %v196
    %920 = vmatmul.bf16.gmra.mxu0 %v907
    %v921 = vpop.f32.mrf.mxu0
    %v922 = vadd.f32 %v905, %v921
    %v923 = vpop.f32.mrf.mxu0
    %v924 = vadd.f32 %v905, %v923
    %925 = vmatmul.bf16.gmra.mxu0 %v910
    %v926 = vpop.f32.mrf.mxu0
    %v927 = vadd.f32 %v905, %v926
    %v928 = vpop.f32.mrf.mxu0
    %v929 = vadd.f32 %v905, %v928
    %930 = vdwg.mxu0
    %v931 = vmax.f32 %v922, 0.0
    %v932 = vmax.f32 %v924, 0.0
    %v933 = vmax.f32 %v927, 0.0
    %v934 = vmax.f32 %v929, 0.0
    %v935 = vpack.c.bf16 %v932, %v931
    %v936 = vpack.c.bf16 %v934, %v933
    %v937 = vperm.slane %v182, 0
    %vm938 = vcmask 523264
    %v940 = vsel %vm938, %v935, 0
    %v943 = vsel %vm938, %v936, 0
    %945 = vmatpush.bf16.msra.mxu0 0
    %946 = vmatpush.bf16.msra.mxu0 0
    %947 = vmatpush.bf16.msra.mxu0 0
    %948 = vmatpush.bf16.msra.mxu0 0
    %949 = vmatpush.bf16.msra.mxu0 %v209
    %950 = vmatpush.bf16.msra.mxu0 %v208
    %951 = vmatpush.bf16.msra.mxu0 %v207
    %952 = vmatpush.bf16.msra.mxu0 %v206
    %953 = vmatmul.bf16.gmra.mxu0 %v940
    %v954 = vpop.f32.mrf.mxu0
    %v955 = vadd.f32 %v937, %v954
    %v956 = vpop.f32.mrf.mxu0
    %v957 = vadd.f32 %v937, %v956
    %958 = vmatmul.bf16.gmra.mxu0 %v943
    %v959 = vpop.f32.mrf.mxu0
    %v960 = vadd.f32 %v937, %v959
    %v961 = vpop.f32.mrf.mxu0
    %v962 = vadd.f32 %v937, %v961
    %963 = vdwg.mxu0
    %v964 = vadd.f32 %v899, %v955
    %v965 = vadd.f32 %v900, %v957
    %v966 = vadd.f32 %v901, %v960
    %v967 = vadd.f32 %v902, %v962
    %v968 = vsel %vm213, %v964, 0.0
    %969 = vadd.xlane.f32.xlu0 %v968
    %v970 = vpop.xlane.xlu0 %969
    %v971 = vsel %vm213, %v965, 0.0
    %972 = vadd.xlane.f32.xlu0 %v971
    %v973 = vpop.xlane.xlu0 %972
    %v974 = vsel %vm213, %v966, 0.0
    %975 = vadd.xlane.f32.xlu0 %v974
    %v976 = vpop.xlane.xlu0 %975
    %v977 = vsel %vm213, %v967, 0.0
    %978 = vadd.xlane.f32.xlu0 %v977
    %v979 = vpop.xlane.xlu0 %978
    %v980 = vmul.f32 %v970, %v816
    %v981 = vmul.f32 %v973, %v816
    %v982 = vmul.f32 %v976, %v816
    %v983 = vmul.f32 %v979, %v816
    %v984 = vsub.f32 %v964, %v980
    %v985 = vsub.f32 %v965, %v981
    %v986 = vsub.f32 %v966, %v982
    %v987 = vsub.f32 %v967, %v983
    %v988 = vmul.f32 %v984, %v984
    %v989 = vmul.f32 %v985, %v985
    %v990 = vmul.f32 %v986, %v986
    %v991 = vmul.f32 %v987, %v987
    %v992 = vsel %vm213, %v988, 0.0
    %993 = vadd.xlane.f32.xlu0 %v992
    %v994 = vpop.xlane.xlu0 %993
    %v995 = vsel %vm213, %v989, 0.0
    %996 = vadd.xlane.f32.xlu0 %v995
    %v997 = vpop.xlane.xlu0 %996
    %v998 = vsel %vm213, %v990, 0.0
    %999 = vadd.xlane.f32.xlu0 %v998
    %v1000 = vpop.xlane.xlu0 %999
    %v1001 = vsel %vm213, %v991, 0.0
    %1002 = vadd.xlane.f32.xlu0 %v1001
    %v1003 = vpop.xlane.xlu0 %1002
    %v1004 = vmul.f32 %v994, %v816
    %v1005 = vmul.f32 %v997, %v816
    %v1006 = vmul.f32 %v1000, %v816
    %v1007 = vmul.f32 %v1003, %v816
    %v1008 = vadd.f32 %v1004, 1e-05
    %v1009 = vadd.f32 %v1005, 1e-05
    %v1010 = vadd.f32 %v1006, 1e-05
    %v1011 = vadd.f32 %v1007, 1e-05
    %v1012 = vrsqrt.pop %v1008
    %v1013 = vmul.f32 %v1012, %v1008
    %v1014 = vmul.f32 %v1013, %v1012
    %v1015 = vmul.f32 0.5, %v1014
    %v1016 = vsub.f32 1.5, %v1015
    %v1017 = vmul.f32 %v1012, %v1016
    %vm1018 = vweird.f32 %v1008
    %vm1019 = vweird.f32 %v1012
    %vm1020 = vmor %vm1018, %vm1019
    %v1021 = vsel %vm1020, %v1012, %v1017
    %v1022 = vrsqrt.pop %v1009
    %v1023 = vmul.f32 %v1022, %v1009
    %v1024 = vmul.f32 %v1023, %v1022
    %v1025 = vmul.f32 0.5, %v1024
    %v1026 = vsub.f32 1.5, %v1025
    %v1027 = vmul.f32 %v1022, %v1026
    %vm1028 = vweird.f32 %v1009
    %vm1029 = vweird.f32 %v1022
    %vm1030 = vmor %vm1028, %vm1029
    %v1031 = vsel %vm1030, %v1022, %v1027
    %v1032 = vrsqrt.pop %v1010
    %v1033 = vmul.f32 %v1032, %v1010
    %v1034 = vmul.f32 %v1033, %v1032
    %v1035 = vmul.f32 0.5, %v1034
    %v1036 = vsub.f32 1.5, %v1035
    %v1037 = vmul.f32 %v1032, %v1036
    %vm1038 = vweird.f32 %v1010
    %vm1039 = vweird.f32 %v1032
    %vm1040 = vmor %vm1038, %vm1039
    %v1041 = vsel %vm1040, %v1032, %v1037
    %v1042 = vrsqrt.pop %v1011
    %v1043 = vmul.f32 %v1042, %v1011
    %v1044 = vmul.f32 %v1043, %v1042
    %v1045 = vmul.f32 0.5, %v1044
    %v1046 = vsub.f32 1.5, %v1045
    %v1047 = vmul.f32 %v1042, %v1046
    %vm1048 = vweird.f32 %v1011
    %vm1049 = vweird.f32 %v1042
    %vm1050 = vmor %vm1048, %vm1049
    %v1051 = vsel %vm1050, %v1042, %v1047
    %v1052 = vmul.f32 %v984, %v1021
    %v1053 = vmul.f32 %v985, %v1031
    %v1054 = vmul.f32 %v986, %v1041
    %v1055 = vmul.f32 %v987, %v1051
    %v1056 = vperm.slane %v183, 0
    %v1057 = vmul.f32 %v1052, %v1056
    %v1058 = vmul.f32 %v1053, %v1056
    %v1059 = vmul.f32 %v1054, %v1056
    %v1060 = vmul.f32 %v1055, %v1056
    %v1061 = vperm.slane %v184, 0
    %v1062 = vadd.f32 %v1057, %v1061
    %v1063 = vadd.f32 %v1058, %v1061
    %v1064 = vadd.f32 %v1059, %v1061
    %v1065 = vadd.f32 %v1060, %v1061
    %v1066 = vld [vmem:[#allocation2 + $0xe8] sm:$0xff]
    %v1067 = vld [vmem:[#allocation2 + $0xf0] sm:$0xff]
    %v1068 = vld [vmem:[#allocation2 + $0xf8] sm:$0xff]
    %v1069 = vld [vmem:[#allocation2 + $0x100] sm:$0xff]
    %v1070 = vpack.c.bf16 %v1067, %v1066
    %v1071 = vpack.c.bf16 %v1069, %v1068
    %v1072 = vld [vmem:[#allocation2 + $0x108] sm:$0x1]
    %v1073 = vld [vmem:[#allocation2 + $0x109] sm:$0x1]
    %v1074 = vld [vmem:[#allocation2 + $0x10a] sm:$0x1]
    %v1075 = vld [vmem:[#allocation2 + $0x10b] sm:$0x1]
    %v1076 = vld [vmem:[#allocation2 + $0x10c] sm:$0x1]
    %v1077 = vld [vmem:[#allocation2 + $0x10d] sm:$0x1]
    %v1078 = vld [vmem:[#allocation2 + $0x10e] sm:$0x1]
    %v1079 = vld [vmem:[#allocation2 + $0x10f] sm:$0x1]
    %v1080 = vld [vmem:[#allocation2 + $0x110] sm:$0xff]
    %v1081 = vld [vmem:[#allocation2 + $0x118] sm:$0xff]
    %v1082 = vld [vmem:[#allocation2 + $0x120] sm:$0xff]
    %v1083 = vld [vmem:[#allocation2 + $0x128] sm:$0xff]
    %v1084 = vpack.c.bf16 %v1081, %v1080
    %v1085 = vpack.c.bf16 %v1083, %v1082
    %v1086 = vld [vmem:[#allocation2 + $0x130] sm:$0xff]
    %v1087 = vld [vmem:[#allocation2 + $0x138] sm:$0xff]
    %v1088 = vld [vmem:[#allocation2 + $0x140] sm:$0xff]
    %v1089 = vld [vmem:[#allocation2 + $0x148] sm:$0xff]
    %v1090 = vpack.c.bf16 %v1087, %v1086
    %v1091 = vpack.c.bf16 %v1089, %v1088
    %v1092 = vld [vmem:[#allocation2 + $0x150] sm:$0xff]
    %v1093 = vld [vmem:[#allocation2 + $0x158] sm:$0xff]
    %v1094 = vld [vmem:[#allocation2 + $0x160] sm:$0xff]
    %v1095 = vld [vmem:[#allocation2 + $0x168] sm:$0xff]
    %v1096 = vld [vmem:[#allocation2 + $0x170] sm:$0xff]
    %v1097 = vld [vmem:[#allocation2 + $0x178] sm:$0xff]
    %v1098 = vld [vmem:[#allocation2 + $0x180] sm:$0xff]
    %v1099 = vld [vmem:[#allocation2 + $0x188] sm:$0xff]
    %v1100 = vpack.c.bf16 %v1093, %v1092
    %v1101 = vpack.c.bf16 %v1095, %v1094
    %v1102 = vpack.c.bf16 %v1097, %v1096
    %v1103 = vpack.c.bf16 %v1099, %v1098
    %v1104 = vpack.c.bf16 %v1063, %v1062
    %v1105 = vpack.c.bf16 %v1065, %v1064
    %v1106 = vperm.slane %v1072, 0
    %v1108 = vsel %vm213, %v1104, 0
    %v1111 = vsel %vm213, %v1105, 0
    %1113 = vmatpush.bf16.msra.mxu0 0
    %1114 = vmatpush.bf16.msra.mxu0 0
    %1115 = vmatpush.bf16.msra.mxu0 0
    %1116 = vmatpush.bf16.msra.mxu0 0
    %1117 = vmatpush.bf16.msra.mxu0 0
    %1118 = vmatpush.bf16.msra.mxu0 0
    %1119 = vmatpush.bf16.msra.mxu0 %v1071
    %1120 = vmatpush.bf16.msra.mxu0 %v1070
    %1121 = vmatmul.bf16.gmra.mxu0 %v1108
    %v1122 = vpop.f32.mrf.mxu0
    %v1123 = vadd.f32 %v1106, %v1122
    %v1124 = vpop.f32.mrf.mxu0
    %v1125 = vadd.f32 %v1106, %v1124
    %1126 = vmatmul.bf16.gmra.mxu0 %v1111
    %v1127 = vpop.f32.mrf.mxu0
    %v1128 = vadd.f32 %v1106, %v1127
    %v1129 = vpop.f32.mrf.mxu0
    %v1130 = vadd.f32 %v1106, %v1129
    %1131 = vdwg.mxu0
    %v1132 = vpack.c.bf16 %v1125, %v1123
    %v1133 = vpack.c.bf16 %v1130, %v1128
    %1136 = vrot.lane.b32.xlu0 %v1132, 96
    %v1137 = vpop.permute.xlu0 %1136
    %1138 = vrot.lane.b32.xlu0 %v1133, 96
    %v1139 = vpop.permute.xlu0 %1138
    %v1141 = vsel %vm247, %v1132, 0
    %v1144 = vsel %vm247, %v1133, 0
    %v1147 = vsel %vm247, %v1137, 0
    %v1150 = vsel %vm247, %v1139, 0
    %1152 = vmatpush.bf16.xpose.msra.mxu0 0
    %1153 = vmatpush.bf16.xpose.msra.mxu0 0
    %1154 = vmatpush.bf16.xpose.msra.mxu0 0
    %1155 = vmatpush.bf16.xpose.msra.mxu0 0
    %1156 = vmatpush.bf16.xpose.msra.mxu0 0
    %1157 = vmatpush.bf16.xpose.msra.mxu0 0
    %1158 = vmatpush.bf16.xpose.msra.mxu0 %v1150
    %1159 = vmatpush.bf16.xpose.msra.mxu0 %v1147
    %1160 = vmatmul.bf16.gmra.mxu0 %v1141
    %v1161 = vpop.f32.mrf.mxu0
    %v1162 = vadd.f32 %v168, %v1161
    %v1163 = vpop.f32.mrf.mxu0
    %v1164 = vadd.f32 %v169, %v1163
    %1165 = vmatmul.bf16.gmra.mxu0 %v1144
    %v1166 = vpop.f32.mrf.mxu0
    %v1167 = vadd.f32 %v170, %v1166
    %v1168 = vpop.f32.mrf.mxu0
    %v1169 = vadd.f32 %v171, %v1168
    %1170 = vdwg.mxu0
    %v1171 = vsel %vm213, %v1162, -inf
    %1172 = vmax.xlane.f32.xlu0 %v1171
    %v1173 = vpop.xlane.xlu0 %1172
    %v1174 = vsel %vm213, %v1164, -inf
    %1175 = vmax.xlane.f32.xlu0 %v1174
    %v1176 = vpop.xlane.xlu0 %1175
    %v1177 = vsel %vm213, %v1167, -inf
    %1178 = vmax.xlane.f32.xlu0 %v1177
    %v1179 = vpop.xlane.xlu0 %1178
    %v1180 = vsel %vm213, %v1169, -inf
    %1181 = vmax.xlane.f32.xlu0 %v1180
    %v1182 = vpop.xlane.xlu0 %1181
    %v1183 = vsub.f32 %v1162, %v1173
    %v1184 = vsub.f32 %v1164, %v1176
    %v1185 = vsub.f32 %v1167, %v1179
    %v1186 = vsub.f32 %v1169, %v1182
    %v1187 = vmul.f32 %v1183, 1.442695
    %v1188 = vpow.pop %v1187
    %v1189 = vmul.f32 %v1184, 1.442695
    %v1190 = vpow.pop %v1189
    %v1191 = vmul.f32 %v1185, 1.442695
    %v1192 = vpow.pop %v1191
    %v1193 = vmul.f32 %v1186, 1.442695
    %v1194 = vpow.pop %v1193
    %v1195 = vsel %vm213, %v1188, 0.0
    %1196 = vadd.xlane.f32.xlu0 %v1195
    %v1197 = vpop.xlane.xlu0 %1196
    %v1198 = vsel %vm213, %v1190, 0.0
    %1199 = vadd.xlane.f32.xlu0 %v1198
    %v1200 = vpop.xlane.xlu0 %1199
    %v1201 = vsel %vm213, %v1192, 0.0
    %1202 = vadd.xlane.f32.xlu0 %v1201
    %v1203 = vpop.xlane.xlu0 %1202
    %v1204 = vsel %vm213, %v1194, 0.0
    %1205 = vadd.xlane.f32.xlu0 %v1204
    %v1206 = vpop.xlane.xlu0 %1205
    %v1207 = vrcp.pop %v1197
    %v1208 = vrcp.pop %v1200
    %v1209 = vrcp.pop %v1203
    %v1210 = vrcp.pop %v1206
    %v1211 = vmul.f32 %v1188, %v1207
    %v1212 = vmul.f32 %v1190, %v1208
    %v1213 = vmul.f32 %v1192, %v1209
    %v1214 = vmul.f32 %v1194, %v1210
    %v1215 = vpack.c.bf16 %v1212, %v1211
    %v1216 = vpack.c.bf16 %v1214, %v1213
    %1217 = vrot.lane.b32.xlu0 %v1132, 64
    %v1218 = vpop.permute.xlu0 %1217
    %1219 = vrot.lane.b32.xlu0 %v1133, 64
    %v1220 = vpop.permute.xlu0 %1219
    %v1224 = vsel %vm213, %v1215, 0
    %v1227 = vsel %vm213, %v1216, 0
    %1229 = vmatpush.bf16.msra.mxu0 0
    %1230 = vmatpush.bf16.msra.mxu0 0
    %1231 = vmatpush.bf16.msra.mxu0 0
    %1232 = vmatpush.bf16.msra.mxu0 0
    %1233 = vmatpush.bf16.msra.mxu0 0
    %1234 = vmatpush.bf16.msra.mxu0 0
    %1235 = vmatpush.bf16.msra.mxu0 %v1220
    %1236 = vmatpush.bf16.msra.mxu0 %v1218
    %1237 = vmatmul.bf16.gmra.mxu0 %v1224
    %v1238 = vpop.f32.mrf.mxu0
    %v1239 = vadd.f32 0.0, %v1238
    %v1240 = vpop.f32.mrf.mxu0
    %v1241 = vadd.f32 0.0, %v1240
    %1242 = vmatmul.bf16.gmra.mxu0 %v1227
    %v1243 = vpop.f32.mrf.mxu0
    %v1244 = vadd.f32 0.0, %v1243
    %v1245 = vpop.f32.mrf.mxu0
    %v1246 = vadd.f32 0.0, %v1245
    %1247 = vdwg.mxu0
    %1248 = vrot.lane.b32.xlu0 %v1132, 120
    %v1249 = vpop.permute.xlu0 %1248
    %1250 = vrot.lane.b32.xlu0 %v1133, 120
    %v1251 = vpop.permute.xlu0 %1250
    %1252 = vrot.lane.b32.xlu0 %v1132, 88
    %v1253 = vpop.permute.xlu0 %1252
    %1254 = vrot.lane.b32.xlu0 %v1133, 88
    %v1255 = vpop.permute.xlu0 %1254
    %v1257 = vsel %vm247, %v1249, 0
    %v1260 = vsel %vm247, %v1251, 0
    %v1263 = vsel %vm247, %v1253, 0
    %v1266 = vsel %vm247, %v1255, 0
    %1268 = vmatpush.bf16.xpose.msra.mxu0 0
    %1269 = vmatpush.bf16.xpose.msra.mxu0 0
    %1270 = vmatpush.bf16.xpose.msra.mxu0 0
    %1271 = vmatpush.bf16.xpose.msra.mxu0 0
    %1272 = vmatpush.bf16.xpose.msra.mxu0 0
    %1273 = vmatpush.bf16.xpose.msra.mxu0 0
    %1274 = vmatpush.bf16.xpose.msra.mxu0 %v1266
    %1275 = vmatpush.bf16.xpose.msra.mxu0 %v1263
    %1276 = vmatmul.bf16.gmra.mxu0 %v1257
    %v1277 = vpop.f32.mrf.mxu0
    %v1278 = vadd.f32 %v168, %v1277
    %v1279 = vpop.f32.mrf.mxu0
    %v1280 = vadd.f32 %v169, %v1279
    %1281 = vmatmul.bf16.gmra.mxu0 %v1260
    %v1282 = vpop.f32.mrf.mxu0
    %v1283 = vadd.f32 %v170, %v1282
    %v1284 = vpop.f32.mrf.mxu0
    %v1285 = vadd.f32 %v171, %v1284
    %1286 = vdwg.mxu0
    %v1287 = vsel %vm213, %v1278, -inf
    %1288 = vmax.xlane.f32.xlu0 %v1287
    %v1289 = vpop.xlane.xlu0 %1288
    %v1290 = vsel %vm213, %v1280, -inf
    %1291 = vmax.xlane.f32.xlu0 %v1290
    %v1292 = vpop.xlane.xlu0 %1291
    %v1293 = vsel %vm213, %v1283, -inf
    %1294 = vmax.xlane.f32.xlu0 %v1293
    %v1295 = vpop.xlane.xlu0 %1294
    %v1296 = vsel %vm213, %v1285, -inf
    %1297 = vmax.xlane.f32.xlu0 %v1296
    %v1298 = vpop.xlane.xlu0 %1297
    %v1299 = vsub.f32 %v1278, %v1289
    %v1300 = vsub.f32 %v1280, %v1292
    %v1301 = vsub.f32 %v1283, %v1295
    %v1302 = vsub.f32 %v1285, %v1298
    %v1303 = vmul.f32 %v1299, 1.442695
    %v1304 = vpow.pop %v1303
    %v1305 = vmul.f32 %v1300, 1.442695
    %v1306 = vpow.pop %v1305
    %v1307 = vmul.f32 %v1301, 1.442695
    %v1308 = vpow.pop %v1307
    %v1309 = vmul.f32 %v1302, 1.442695
    %v1310 = vpow.pop %v1309
    %v1311 = vsel %vm213, %v1304, 0.0
    %1312 = vadd.xlane.f32.xlu0 %v1311
    %v1313 = vpop.xlane.xlu0 %1312
    %v1314 = vsel %vm213, %v1306, 0.0
    %1315 = vadd.xlane.f32.xlu0 %v1314
    %v1316 = vpop.xlane.xlu0 %1315
    %v1317 = vsel %vm213, %v1308, 0.0
    %1318 = vadd.xlane.f32.xlu0 %v1317
    %v1319 = vpop.xlane.xlu0 %1318
    %v1320 = vsel %vm213, %v1310, 0.0
    %1321 = vadd.xlane.f32.xlu0 %v1320
    %v1322 = vpop.xlane.xlu0 %1321
    %v1323 = vrcp.pop %v1313
    %v1324 = vrcp.pop %v1316
    %v1325 = vrcp.pop %v1319
    %v1326 = vrcp.pop %v1322
    %v1327 = vmul.f32 %v1304, %v1323
    %v1328 = vmul.f32 %v1306, %v1324
    %v1329 = vmul.f32 %v1308, %v1325
    %v1330 = vmul.f32 %v1310, %v1326
    %v1331 = vpack.c.bf16 %v1328, %v1327
    %v1332 = vpack.c.bf16 %v1330, %v1329
    %1333 = vrot.lane.b32.xlu0 %v1132, 56
    %v1334 = vpop.permute.xlu0 %1333
    %1335 = vrot.lane.b32.xlu0 %v1133, 56
    %v1336 = vpop.permute.xlu0 %1335
    %v1340 = vsel %vm213, %v1331, 0
    %v1343 = vsel %vm213, %v1332, 0
    %1345 = vmatpush.bf16.msra.mxu0 0
    %1346 = vmatpush.bf16.msra.mxu0 0
    %1347 = vmatpush.bf16.msra.mxu0 0
    %1348 = vmatpush.bf16.msra.mxu0 0
    %1349 = vmatpush.bf16.msra.mxu0 0
    %1350 = vmatpush.bf16.msra.mxu0 0
    %1351 = vmatpush.bf16.msra.mxu0 %v1336
    %1352 = vmatpush.bf16.msra.mxu0 %v1334
    %1353 = vmatmul.bf16.gmra.mxu0 %v1340
    %v1354 = vpop.f32.mrf.mxu0
    %v1355 = vadd.f32 0.0, %v1354
    %v1356 = vpop.f32.mrf.mxu0
    %v1357 = vadd.f32 0.0, %v1356
    %1358 = vmatmul.bf16.gmra.mxu0 %v1343
    %v1359 = vpop.f32.mrf.mxu0
    %v1360 = vadd.f32 0.0, %v1359
    %v1361 = vpop.f32.mrf.mxu0
    %v1362 = vadd.f32 0.0, %v1361
    %1363 = vdwg.mxu0
    %1364 = vrot.lane.b32.xlu0 %v1132, 112
    %v1365 = vpop.permute.xlu0 %1364
    %1366 = vrot.lane.b32.xlu0 %v1133, 112
    %v1367 = vpop.permute.xlu0 %1366
    %1368 = vrot.lane.b32.xlu0 %v1132, 80
    %v1369 = vpop.permute.xlu0 %1368
    %1370 = vrot.lane.b32.xlu0 %v1133, 80
    %v1371 = vpop.permute.xlu0 %1370
    %v1373 = vsel %vm247, %v1365, 0
    %v1376 = vsel %vm247, %v1367, 0
    %v1379 = vsel %vm247, %v1369, 0
    %v1382 = vsel %vm247, %v1371, 0
    %1384 = vmatpush.bf16.xpose.msra.mxu0 0
    %1385 = vmatpush.bf16.xpose.msra.mxu0 0
    %1386 = vmatpush.bf16.xpose.msra.mxu0 0
    %1387 = vmatpush.bf16.xpose.msra.mxu0 0
    %1388 = vmatpush.bf16.xpose.msra.mxu0 0
    %1389 = vmatpush.bf16.xpose.msra.mxu0 0
    %1390 = vmatpush.bf16.xpose.msra.mxu0 %v1382
    %1391 = vmatpush.bf16.xpose.msra.mxu0 %v1379
    %1392 = vmatmul.bf16.gmra.mxu0 %v1373
    %v1393 = vpop.f32.mrf.mxu0
    %v1394 = vadd.f32 %v168, %v1393
    %v1395 = vpop.f32.mrf.mxu0
    %v1396 = vadd.f32 %v169, %v1395
    %1397 = vmatmul.bf16.gmra.mxu0 %v1376
    %v1398 = vpop.f32.mrf.mxu0
    %v1399 = vadd.f32 %v170, %v1398
    %v1400 = vpop.f32.mrf.mxu0
    %v1401 = vadd.f32 %v171, %v1400
    %1402 = vdwg.mxu0
    %v1403 = vsel %vm213, %v1394, -inf
    %1404 = vmax.xlane.f32.xlu0 %v1403
    %v1405 = vpop.xlane.xlu0 %1404
    %v1406 = vsel %vm213, %v1396, -inf
    %1407 = vmax.xlane.f32.xlu0 %v1406
    %v1408 = vpop.xlane.xlu0 %1407
    %v1409 = vsel %vm213, %v1399, -inf
    %1410 = vmax.xlane.f32.xlu0 %v1409
    %v1411 = vpop.xlane.xlu0 %1410
    %v1412 = vsel %vm213, %v1401, -inf
    %1413 = vmax.xlane.f32.xlu0 %v1412
    %v1414 = vpop.xlane.xlu0 %1413
    %v1415 = vsub.f32 %v1394, %v1405
    %v1416 = vsub.f32 %v1396, %v1408
    %v1417 = vsub.f32 %v1399, %v1411
    %v1418 = vsub.f32 %v1401, %v1414
    %v1419 = vmul.f32 %v1415, 1.442695
    %v1420 = vpow.pop %v1419
    %v1421 = vmul.f32 %v1416, 1.442695
    %v1422 = vpow.pop %v1421
    %v1423 = vmul.f32 %v1417, 1.442695
    %v1424 = vpow.pop %v1423
    %v1425 = vmul.f32 %v1418, 1.442695
    %v1426 = vpow.pop %v1425
    %v1427 = vsel %vm213, %v1420, 0.0
    %1428 = vadd.xlane.f32.xlu0 %v1427
    %v1429 = vpop.xlane.xlu0 %1428
    %v1430 = vsel %vm213, %v1422, 0.0
    %1431 = vadd.xlane.f32.xlu0 %v1430
    %v1432 = vpop.xlane.xlu0 %1431
    %v1433 = vsel %vm213, %v1424, 0.0
    %1434 = vadd.xlane.f32.xlu0 %v1433
    %v1435 = vpop.xlane.xlu0 %1434
    %v1436 = vsel %vm213, %v1426, 0.0
    %1437 = vadd.xlane.f32.xlu0 %v1436
    %v1438 = vpop.xlane.xlu0 %1437
    %v1439 = vrcp.pop %v1429
    %v1440 = vrcp.pop %v1432
    %v1441 = vrcp.pop %v1435
    %v1442 = vrcp.pop %v1438
    %v1443 = vmul.f32 %v1420, %v1439
    %v1444 = vmul.f32 %v1422, %v1440
    %v1445 = vmul.f32 %v1424, %v1441
    %v1446 = vmul.f32 %v1426, %v1442
    %v1447 = vpack.c.bf16 %v1444, %v1443
    %v1448 = vpack.c.bf16 %v1446, %v1445
    %1449 = vrot.lane.b32.xlu0 %v1132, 48
    %v1450 = vpop.permute.xlu0 %1449
    %1451 = vrot.lane.b32.xlu0 %v1133, 48
    %v1452 = vpop.permute.xlu0 %1451
    %v1456 = vsel %vm213, %v1447, 0
    %v1459 = vsel %vm213, %v1448, 0
    %1461 = vmatpush.bf16.msra.mxu0 0
    %1462 = vmatpush.bf16.msra.mxu0 0
    %1463 = vmatpush.bf16.msra.mxu0 0
    %1464 = vmatpush.bf16.msra.mxu0 0
    %1465 = vmatpush.bf16.msra.mxu0 0
    %1466 = vmatpush.bf16.msra.mxu0 0
    %1467 = vmatpush.bf16.msra.mxu0 %v1452
    %1468 = vmatpush.bf16.msra.mxu0 %v1450
    %1469 = vmatmul.bf16.gmra.mxu0 %v1456
    %v1470 = vpop.f32.mrf.mxu0
    %v1471 = vadd.f32 0.0, %v1470
    %v1472 = vpop.f32.mrf.mxu0
    %v1473 = vadd.f32 0.0, %v1472
    %1474 = vmatmul.bf16.gmra.mxu0 %v1459
    %v1475 = vpop.f32.mrf.mxu0
    %v1476 = vadd.f32 0.0, %v1475
    %v1477 = vpop.f32.mrf.mxu0
    %v1478 = vadd.f32 0.0, %v1477
    %1479 = vdwg.mxu0
    %1480 = vrot.lane.b32.xlu0 %v1132, 104
    %v1481 = vpop.permute.xlu0 %1480
    %1482 = vrot.lane.b32.xlu0 %v1133, 104
    %v1483 = vpop.permute.xlu0 %1482
    %1484 = vrot.lane.b32.xlu0 %v1132, 72
    %v1485 = vpop.permute.xlu0 %1484
    %1486 = vrot.lane.b32.xlu0 %v1133, 72
    %v1487 = vpop.permute.xlu0 %1486
    %v1489 = vsel %vm247, %v1481, 0
    %v1492 = vsel %vm247, %v1483, 0
    %v1495 = vsel %vm247, %v1485, 0
    %v1498 = vsel %vm247, %v1487, 0
    %1500 = vmatpush.bf16.xpose.msra.mxu0 0
    %1501 = vmatpush.bf16.xpose.msra.mxu0 0
    %1502 = vmatpush.bf16.xpose.msra.mxu0 0
    %1503 = vmatpush.bf16.xpose.msra.mxu0 0
    %1504 = vmatpush.bf16.xpose.msra.mxu0 0
    %1505 = vmatpush.bf16.xpose.msra.mxu0 0
    %1506 = vmatpush.bf16.xpose.msra.mxu0 %v1498
    %1507 = vmatpush.bf16.xpose.msra.mxu0 %v1495
    %1508 = vmatmul.bf16.gmra.mxu0 %v1489
    %v1509 = vpop.f32.mrf.mxu0
    %v1510 = vadd.f32 %v168, %v1509
    %v1511 = vpop.f32.mrf.mxu0
    %v1512 = vadd.f32 %v169, %v1511
    %1513 = vmatmul.bf16.gmra.mxu0 %v1492
    %v1514 = vpop.f32.mrf.mxu0
    %v1515 = vadd.f32 %v170, %v1514
    %v1516 = vpop.f32.mrf.mxu0
    %v1517 = vadd.f32 %v171, %v1516
    %1518 = vdwg.mxu0
    %v1519 = vsel %vm213, %v1510, -inf
    %1520 = vmax.xlane.f32.xlu0 %v1519
    %v1521 = vpop.xlane.xlu0 %1520
    %v1522 = vsel %vm213, %v1512, -inf
    %1523 = vmax.xlane.f32.xlu0 %v1522
    %v1524 = vpop.xlane.xlu0 %1523
    %v1525 = vsel %vm213, %v1515, -inf
    %1526 = vmax.xlane.f32.xlu0 %v1525
    %v1527 = vpop.xlane.xlu0 %1526
    %v1528 = vsel %vm213, %v1517, -inf
    %1529 = vmax.xlane.f32.xlu0 %v1528
    %v1530 = vpop.xlane.xlu0 %1529
    %v1531 = vsub.f32 %v1510, %v1521
    %v1532 = vsub.f32 %v1512, %v1524
    %v1533 = vsub.f32 %v1515, %v1527
    %v1534 = vsub.f32 %v1517, %v1530
    %v1535 = vmul.f32 %v1531, 1.442695
    %v1536 = vpow.pop %v1535
    %v1537 = vmul.f32 %v1532, 1.442695
    %v1538 = vpow.pop %v1537
    %v1539 = vmul.f32 %v1533, 1.442695
    %v1540 = vpow.pop %v1539
    %v1541 = vmul.f32 %v1534, 1.442695
    %v1542 = vpow.pop %v1541
    %v1543 = vsel %vm213, %v1536, 0.0
    %1544 = vadd.xlane.f32.xlu0 %v1543
    %v1545 = vpop.xlane.xlu0 %1544
    %v1546 = vsel %vm213, %v1538, 0.0
    %1547 = vadd.xlane.f32.xlu0 %v1546
    %v1548 = vpop.xlane.xlu0 %1547
    %v1549 = vsel %vm213, %v1540, 0.0
    %1550 = vadd.xlane.f32.xlu0 %v1549
    %v1551 = vpop.xlane.xlu0 %1550
    %v1552 = vsel %vm213, %v1542, 0.0
    %1553 = vadd.xlane.f32.xlu0 %v1552
    %v1554 = vpop.xlane.xlu0 %1553
    %v1555 = vrcp.pop %v1545
    %v1556 = vrcp.pop %v1548
    %v1557 = vrcp.pop %v1551
    %v1558 = vrcp.pop %v1554
    %v1559 = vmul.f32 %v1536, %v1555
    %v1560 = vmul.f32 %v1538, %v1556
    %v1561 = vmul.f32 %v1540, %v1557
    %v1562 = vmul.f32 %v1542, %v1558
    %v1563 = vpack.c.bf16 %v1560, %v1559
    %v1564 = vpack.c.bf16 %v1562, %v1561
    %1565 = vrot.lane.b32.xlu0 %v1132, 40
    %v1566 = vpop.permute.xlu0 %1565
    %1567 = vrot.lane.b32.xlu0 %v1133, 40
    %v1568 = vpop.permute.xlu0 %1567
    %v1572 = vsel %vm213, %v1563, 0
    %v1575 = vsel %vm213, %v1564, 0
    %1577 = vmatpush.bf16.msra.mxu0 0
    %1578 = vmatpush.bf16.msra.mxu0 0
    %1579 = vmatpush.bf16.msra.mxu0 0
    %1580 = vmatpush.bf16.msra.mxu0 0
    %1581 = vmatpush.bf16.msra.mxu0 0
    %1582 = vmatpush.bf16.msra.mxu0 0
    %1583 = vmatpush.bf16.msra.mxu0 %v1568
    %1584 = vmatpush.bf16.msra.mxu0 %v1566
    %1585 = vmatmul.bf16.gmra.mxu0 %v1572
    %v1586 = vpop.f32.mrf.mxu0
    %v1587 = vadd.f32 0.0, %v1586
    %v1588 = vpop.f32.mrf.mxu0
    %v1589 = vadd.f32 0.0, %v1588
    %1590 = vmatmul.bf16.gmra.mxu0 %v1575
    %v1591 = vpop.f32.mrf.mxu0
    %v1592 = vadd.f32 0.0, %v1591
    %v1593 = vpop.f32.mrf.mxu0
    %v1594 = vadd.f32 0.0, %v1593
    %1595 = vdwg.mxu0
    %1600 = vrot.lane.b32.xlu0 %v1355, 8
    %v1601 = vpop.permute.xlu0 %1600
    %1602 = vrot.lane.b32.xlu0 %v1357, 8
    %v1603 = vpop.permute.xlu0 %1602
    %1604 = vrot.lane.b32.xlu0 %v1360, 8
    %v1605 = vpop.permute.xlu0 %1604
    %1606 = vrot.lane.b32.xlu0 %v1362, 8
    %v1607 = vpop.permute.xlu0 %1606
    %1616 = vrot.lane.b32.xlu0 %v1471, 16
    %v1617 = vpop.permute.xlu0 %1616
    %1618 = vrot.lane.b32.xlu0 %v1473, 16
    %v1619 = vpop.permute.xlu0 %1618
    %1620 = vrot.lane.b32.xlu0 %v1476, 16
    %v1621 = vpop.permute.xlu0 %1620
    %1622 = vrot.lane.b32.xlu0 %v1478, 16
    %v1623 = vpop.permute.xlu0 %1622
    %1632 = vrot.lane.b32.xlu0 %v1587, 24
    %v1633 = vpop.permute.xlu0 %1632
    %1634 = vrot.lane.b32.xlu0 %v1589, 24
    %v1635 = vpop.permute.xlu0 %1634
    %1636 = vrot.lane.b32.xlu0 %v1592, 24
    %v1637 = vpop.permute.xlu0 %1636
    %1638 = vrot.lane.b32.xlu0 %v1594, 24
    %v1639 = vpop.permute.xlu0 %1638
    %v1644 = vsel %vm247, %v1239, %v1601
    %v1645 = vsel %vm247, %v1241, %v1603
    %v1646 = vsel %vm247, %v1244, %v1605
    %v1647 = vsel %vm247, %v1246, %v1607
    %v1648 = vsel %vm756, %v1644, %v1617
    %v1649 = vsel %vm756, %v1645, %v1619
    %v1650 = vsel %vm756, %v1646, %v1621
    %v1651 = vsel %vm756, %v1647, %v1623
    %v1652 = vsel %vm761, %v1648, %v1633
    %v1653 = vsel %vm761, %v1649, %v1635
    %v1654 = vsel %vm761, %v1650, %v1637
    %v1655 = vsel %vm761, %v1651, %v1639
    %v1656 = vpack.c.bf16 %v1653, %v1652
    %v1657 = vpack.c.bf16 %v1655, %v1654
    %v1658 = vperm.slane %v1073, 0
    %v1660 = vsel %vm213, %v1656, 0
    %v1663 = vsel %vm213, %v1657, 0
    %1665 = vmatpush.bf16.msra.mxu0 0
    %1666 = vmatpush.bf16.msra.mxu0 0
    %1667 = vmatpush.bf16.msra.mxu0 0
    %1668 = vmatpush.bf16.msra.mxu0 0
    %1669 = vmatpush.bf16.msra.mxu0 0
    %1670 = vmatpush.bf16.msra.mxu0 0
    %1671 = vmatpush.bf16.msra.mxu0 %v1085
    %1672 = vmatpush.bf16.msra.mxu0 %v1084
    %1673 = vmatmul.bf16.gmra.mxu0 %v1660
    %v1674 = vpop.f32.mrf.mxu0
    %v1675 = vadd.f32 %v1658, %v1674
    %v1676 = vpop.f32.mrf.mxu0
    %v1677 = vadd.f32 %v1658, %v1676
    %1678 = vmatmul.bf16.gmra.mxu0 %v1663
    %v1679 = vpop.f32.mrf.mxu0
    %v1680 = vadd.f32 %v1658, %v1679
    %v1681 = vpop.f32.mrf.mxu0
    %v1682 = vadd.f32 %v1658, %v1681
    %1683 = vdwg.mxu0
    %v1684 = vadd.f32 %v1062, %v1675
    %v1685 = vadd.f32 %v1063, %v1677
    %v1686 = vadd.f32 %v1064, %v1680
    %v1687 = vadd.f32 %v1065, %v1682
    %v1688 = vsel %vm213, %v1684, 0.0
    %1689 = vadd.xlane.f32.xlu0 %v1688
    %v1690 = vpop.xlane.xlu0 %1689
    %v1691 = vsel %vm213, %v1685, 0.0
    %1692 = vadd.xlane.f32.xlu0 %v1691
    %v1693 = vpop.xlane.xlu0 %1692
    %v1694 = vsel %vm213, %v1686, 0.0
    %1695 = vadd.xlane.f32.xlu0 %v1694
    %v1696 = vpop.xlane.xlu0 %1695
    %v1697 = vsel %vm213, %v1687, 0.0
    %1698 = vadd.xlane.f32.xlu0 %v1697
    %v1699 = vpop.xlane.xlu0 %1698
    %v1700 = vmul.f32 %v1690, %v816
    %v1701 = vmul.f32 %v1693, %v816
    %v1702 = vmul.f32 %v1696, %v816
    %v1703 = vmul.f32 %v1699, %v816
    %v1704 = vsub.f32 %v1684, %v1700
    %v1705 = vsub.f32 %v1685, %v1701
    %v1706 = vsub.f32 %v1686, %v1702
    %v1707 = vsub.f32 %v1687, %v1703
    %v1708 = vmul.f32 %v1704, %v1704
    %v1709 = vmul.f32 %v1705, %v1705
    %v1710 = vmul.f32 %v1706, %v1706
    %v1711 = vmul.f32 %v1707, %v1707
    %v1712 = vsel %vm213, %v1708, 0.0
    %1713 = vadd.xlane.f32.xlu0 %v1712
    %v1714 = vpop.xlane.xlu0 %1713
    %v1715 = vsel %vm213, %v1709, 0.0
    %1716 = vadd.xlane.f32.xlu0 %v1715
    %v1717 = vpop.xlane.xlu0 %1716
    %v1718 = vsel %vm213, %v1710, 0.0
    %1719 = vadd.xlane.f32.xlu0 %v1718
    %v1720 = vpop.xlane.xlu0 %1719
    %v1721 = vsel %vm213, %v1711, 0.0
    %1722 = vadd.xlane.f32.xlu0 %v1721
    %v1723 = vpop.xlane.xlu0 %1722
    %v1724 = vmul.f32 %v1714, %v816
    %v1725 = vmul.f32 %v1717, %v816
    %v1726 = vmul.f32 %v1720, %v816
    %v1727 = vmul.f32 %v1723, %v816
    %v1728 = vadd.f32 %v1724, 1e-05
    %v1729 = vadd.f32 %v1725, 1e-05
    %v1730 = vadd.f32 %v1726, 1e-05
    %v1731 = vadd.f32 %v1727, 1e-05
    %v1732 = vrsqrt.pop %v1728
    %v1733 = vmul.f32 %v1732, %v1728
    %v1734 = vmul.f32 %v1733, %v1732
    %v1735 = vmul.f32 0.5, %v1734
    %v1736 = vsub.f32 1.5, %v1735
    %v1737 = vmul.f32 %v1732, %v1736
    %vm1738 = vweird.f32 %v1728
    %vm1739 = vweird.f32 %v1732
    %vm1740 = vmor %vm1738, %vm1739
    %v1741 = vsel %vm1740, %v1732, %v1737
    %v1742 = vrsqrt.pop %v1729
    %v1743 = vmul.f32 %v1742, %v1729
    %v1744 = vmul.f32 %v1743, %v1742
    %v1745 = vmul.f32 0.5, %v1744
    %v1746 = vsub.f32 1.5, %v1745
    %v1747 = vmul.f32 %v1742, %v1746
    %vm1748 = vweird.f32 %v1729
    %vm1749 = vweird.f32 %v1742
    %vm1750 = vmor %vm1748, %vm1749
    %v1751 = vsel %vm1750, %v1742, %v1747
    %v1752 = vrsqrt.pop %v1730
    %v1753 = vmul.f32 %v1752, %v1730
    %v1754 = vmul.f32 %v1753, %v1752
    %v1755 = vmul.f32 0.5, %v1754
    %v1756 = vsub.f32 1.5, %v1755
    %v1757 = vmul.f32 %v1752, %v1756
    %vm1758 = vweird.f32 %v1730
    %vm1759 = vweird.f32 %v1752
    %vm1760 = vmor %vm1758, %vm1759
    %v1761 = vsel %vm1760, %v1752, %v1757
    %v1762 = vrsqrt.pop %v1731
    %v1763 = vmul.f32 %v1762, %v1731
    %v1764 = vmul.f32 %v1763, %v1762
    %v1765 = vmul.f32 0.5, %v1764
    %v1766 = vsub.f32 1.5, %v1765
    %v1767 = vmul.f32 %v1762, %v1766
    %vm1768 = vweird.f32 %v1731
    %vm1769 = vweird.f32 %v1762
    %vm1770 = vmor %vm1768, %vm1769
    %v1771 = vsel %vm1770, %v1762, %v1767
    %v1772 = vmul.f32 %v1704, %v1741
    %v1773 = vmul.f32 %v1705, %v1751
    %v1774 = vmul.f32 %v1706, %v1761
    %v1775 = vmul.f32 %v1707, %v1771
    %v1776 = vperm.slane %v1074, 0
    %v1777 = vmul.f32 %v1772, %v1776
    %v1778 = vmul.f32 %v1773, %v1776
    %v1779 = vmul.f32 %v1774, %v1776
    %v1780 = vmul.f32 %v1775, %v1776
    %v1781 = vperm.slane %v1075, 0
    %v1782 = vadd.f32 %v1777, %v1781
    %v1783 = vadd.f32 %v1778, %v1781
    %v1784 = vadd.f32 %v1779, %v1781
    %v1785 = vadd.f32 %v1780, %v1781
    %v1786 = vpack.c.bf16 %v1783, %v1782
    %v1787 = vpack.c.bf16 %v1785, %v1784
    %v1788 = vperm.slane %v1079, 0
    %v1790 = vsel %vm213, %v1786, 0
    %v1793 = vsel %vm213, %v1787, 0
    %1795 = vmatpush.bf16.msra.mxu0 0
    %1796 = vmatpush.bf16.msra.mxu0 0
    %1797 = vmatpush.bf16.msra.mxu0 0
    %1798 = vmatpush.bf16.msra.mxu0 0
    %1799 = vmatpush.bf16.msra.mxu0 0
    %1800 = vmatpush.bf16.msra.mxu0 0
    %1801 = vmatpush.bf16.msra.mxu0 %v1091
    %1802 = vmatpush.bf16.msra.mxu0 %v1090
    %1803 = vmatmul.bf16.gmra.mxu0 %v1790
    %v1804 = vpop.f32.mrf.mxu0
    %v1805 = vadd.f32 %v1788, %v1804
    %v1806 = vpop.f32.mrf.mxu0
    %v1807 = vadd.f32 %v1788, %v1806
    %1808 = vmatmul.bf16.gmra.mxu0 %v1793
    %v1809 = vpop.f32.mrf.mxu0
    %v1810 = vadd.f32 %v1788, %v1809
    %v1811 = vpop.f32.mrf.mxu0
    %v1812 = vadd.f32 %v1788, %v1811
    %1813 = vdwg.mxu0
    %v1814 = vmax.f32 %v1805, 0.0
    %v1815 = vmax.f32 %v1807, 0.0
    %v1816 = vmax.f32 %v1810, 0.0
    %v1817 = vmax.f32 %v1812, 0.0
    %v1818 = vpack.c.bf16 %v1815, %v1814
    %v1819 = vpack.c.bf16 %v1817, %v1816
    %v1820 = vperm.slane %v1076, 0
    %v1822 = vsel %vm938, %v1818, 0
    %v1825 = vsel %vm938, %v1819, 0
    %1827 = vmatpush.bf16.msra.mxu0 0
    %1828 = vmatpush.bf16.msra.mxu0 0
    %1829 = vmatpush.bf16.msra.mxu0 0
    %1830 = vmatpush.bf16.msra.mxu0 0
    %1831 = vmatpush.bf16.msra.mxu0 %v1103
    %1832 = vmatpush.bf16.msra.mxu0 %v1102
    %1833 = vmatpush.bf16.msra.mxu0 %v1101
    %1834 = vmatpush.bf16.msra.mxu0 %v1100
    %1835 = vmatmul.bf16.gmra.mxu0 %v1822
    %v1836 = vpop.f32.mrf.mxu0
    %v1837 = vpop.f32.mrf.mxu0
    %1838 = vmatmul.bf16.gmra.mxu0 %v1825
    %v1839 = vpop.f32.mrf.mxu0
    %v1840 = vadd.f32 %v1820, %v1839
    %v1841 = vpop.f32.mrf.mxu0
    %v1842 = vadd.f32 %v1820, %v1841
    %1843 = vdwg.mxu0
    %v1844 = vadd.f32 %v1784, %v1840
    %v1845 = vadd.f32 %v1785, %v1842
    %v1846 = vsel %vm213, %v1844, 0.0
    %1847 = vadd.xlane.f32.xlu0 %v1846
    %v1848 = vpop.xlane.xlu0 %1847
    %v1849 = vsel %vm213, %v1845, 0.0
    %1850 = vadd.xlane.f32.xlu0 %v1849
    %v1851 = vpop.xlane.xlu0 %1850
    %v1852 = vmul.f32 %v1848, %v816
    %v1853 = vmul.f32 %v1851, %v816
    %v1854 = vsub.f32 %v1844, %v1852
    %v1855 = vsub.f32 %v1845, %v1853
    %v1856 = vmul.f32 %v1854, %v1854
    %v1857 = vmul.f32 %v1855, %v1855
    %v1858 = vsel %vm213, %v1856, 0.0
    %1859 = vadd.xlane.f32.xlu0 %v1858
    %v1860 = vpop.xlane.xlu0 %1859
    %v1861 = vsel %vm213, %v1857, 0.0
    %1862 = vadd.xlane.f32.xlu0 %v1861
    %v1863 = vpop.xlane.xlu0 %1862
    %v1864 = vmul.f32 %v1860, %v816
    %v1865 = vmul.f32 %v1863, %v816
    %v1866 = vadd.f32 %v1864, 1e-05
    %v1867 = vadd.f32 %v1865, 1e-05
    %v1868 = vrsqrt.pop %v1866
    %v1869 = vmul.f32 %v1868, %v1866
    %v1870 = vmul.f32 %v1869, %v1868
    %v1871 = vmul.f32 0.5, %v1870
    %v1872 = vsub.f32 1.5, %v1871
    %v1873 = vmul.f32 %v1868, %v1872
    %vm1874 = vweird.f32 %v1866
    %vm1875 = vweird.f32 %v1868
    %vm1876 = vmor %vm1874, %vm1875
    %v1877 = vsel %vm1876, %v1868, %v1873
    %v1878 = vrsqrt.pop %v1867
    %v1879 = vmul.f32 %v1878, %v1867
    %v1880 = vmul.f32 %v1879, %v1878
    %v1881 = vmul.f32 0.5, %v1880
    %v1882 = vsub.f32 1.5, %v1881
    %v1883 = vmul.f32 %v1878, %v1882
    %vm1884 = vweird.f32 %v1867
    %vm1885 = vweird.f32 %v1878
    %vm1886 = vmor %vm1884, %vm1885
    %v1887 = vsel %vm1886, %v1878, %v1883
    %v1888 = vmul.f32 %v1854, %v1877
    %v1889 = vmul.f32 %v1855, %v1887
    %v1890 = vperm.slane %v1077, 0
    %v1891 = vmul.f32 %v1888, %v1890
    %v1892 = vmul.f32 %v1889, %v1890
    %v1893 = vperm.slane %v1078, 0
    %v1894 = vadd.f32 %v1891, %v1893
    %v1895 = vadd.f32 %v1892, %v1893
    %v1896 = vld [vmem:[#allocation2 + $0x20] sm:$0xff]
    %v1897 = vld [vmem:[#allocation2 + $0x28] sm:$0xff]
    %v1898 = vld [vmem:[#allocation2 + $0x30] sm:$0xff]
    %v1899 = vld [vmem:[#allocation2 + $0x38] sm:$0xff]
    %v1900 = vpack.c.bf16 %v1897, %v1896
    %v1901 = vpack.c.bf16 %v1899, %v1898
    %v1902 = vld [vmem:[#allocation2 + $0x12] sm:$0x1]
    %v1903 = vpack.c.bf16 %v1895, %v1894
    %v1904 = vperm.slane %v1902, 0
    %v1906 = vsel %vm213, %v1903, 0
    %1908 = vmatpush.bf16.msra.mxu0 0
    %1909 = vmatpush.bf16.msra.mxu0 0
    %1910 = vmatpush.bf16.msra.mxu0 0
    %1911 = vmatpush.bf16.msra.mxu0 0
    %1912 = vmatpush.bf16.msra.mxu0 0
    %1913 = vmatpush.bf16.msra.mxu0 0
    %1914 = vmatpush.bf16.msra.mxu0 %v1901
    %1915 = vmatpush.bf16.msra.mxu0 %v1900
    %1916 = vmatmul.bf16.gmra.mxu0 %v1906
    %v1917 = vpop.f32.mrf.mxu0
    %v1918 = vadd.f32 %v1904, %v1917
    %v1919 = vpop.f32.mrf.mxu0
    %v1920 = vadd.f32 %v1904, %v1919
    %1921 = vdwg.mxu0
    %1924 = vrot.lane.b32.xlu0 %v1918, 126
    %v1925 = vpop.permute.xlu0 %1924
    %1926 = vrot.lane.b32.xlu0 %v1920, 126
    %v1927 = vpop.permute.xlu0 %1926
    %v1930 = vmax.f32 %v1918, %v1925
    %v1931 = vmax.f32 %v1920, %v1927
    %v1932 = vsub.f32 %v1918, %v1930
    %v1933 = vsub.f32 %v1920, %v1931
    %v1934 = vmul.f32 %v1932, 1.442695
    %v1935 = vpow.pop %v1934
    %v1936 = vmul.f32 %v1933, 1.442695
    %v1937 = vpow.pop %v1936
    %1940 = vrot.lane.b32.xlu0 %v1930, 2
    %v1941 = vpop.permute.xlu0 %1940
    %1942 = vrot.lane.b32.xlu0 %v1931, 2
    %v1943 = vpop.permute.xlu0 %1942
    %v1946 = vsub.f32 %v1918, %v1941
    %v1947 = vsub.f32 %v1920, %v1943
    %v1948 = vmul.f32 %v1946, 1.442695
    %v1949 = vpow.pop %v1948
    %v1950 = vmul.f32 %v1947, 1.442695
    %v1951 = vpow.pop %v1950
    %1954 = vrot.lane.b32.xlu0 %v1949, 126
    %v1955 = vpop.permute.xlu0 %1954
    %1956 = vrot.lane.b32.xlu0 %v1951, 126
    %v1957 = vpop.permute.xlu0 %1956
    %v1960 = vadd.f32 %v1935, %v1955
    %v1961 = vadd.f32 %v1937, %v1957
    %v1962 = vrcp.pop %v1960
    %v1963 = vmul.f32 %v1960, %v1962
    %v1964 = vsub.f32 1.0, %v1963
    %v1965 = vmul.f32 %v1962, %v1964
    %v1966 = vadd.f32 %v1962, %v1965
    %vm1967 = vweird.f32 %v1960
    %vm1968 = vweird.f32 %v1962
    %vm1969 = vmor %vm1967, %vm1968
    %v1970 = vsel %vm1969, %v1962, %v1966
    %v1971 = vand.u32 2147483647, %v1960
    %vm1972 = vcmp.eq.f32.partialorder %v1971, 8.507059e+37
    %v1973 = vand.u32 %v1960, 2147483648
    %v1974 = vor.u32 1.1754944e-38, %v1973
    %v1975 = vsel %vm1972, %v1974, %v1970
    %v1976 = vmul.f32 1.0, %v1975
    %v1977 = vrcp.pop %v1961
    %v1978 = vmul.f32 %v1961, %v1977
    %v1979 = vsub.f32 1.0, %v1978
    %v1980 = vmul.f32 %v1977, %v1979
    %v1981 = vadd.f32 %v1977, %v1980
    %vm1982 = vweird.f32 %v1961
    %vm1983 = vweird.f32 %v1977
    %vm1984 = vmor %vm1982, %vm1983
    %v1985 = vsel %vm1984, %v1977, %v1981
    %v1986 = vand.u32 2147483647, %v1961
    %vm1987 = vcmp.eq.f32.partialorder %v1986, 8.507059e+37
    %v1988 = vand.u32 %v1961, 2147483648
    %v1989 = vor.u32 1.1754944e-38, %v1988
    %v1990 = vsel %vm1987, %v1989, %v1985
    %v1991 = vmul.f32 1.0, %v1990
    %v1992 = vmul.f32 %v1935, %v1976
    %v1993 = vmul.f32 %v1937, %v1991
    %1996 = vrot.lane.b32.xlu0 %v1976, 2
    %v1997 = vpop.permute.xlu0 %1996
    %1998 = vrot.lane.b32.xlu0 %v1991, 2
    %v1999 = vpop.permute.xlu0 %1998
    %v2002 = vmul.f32 %v1949, %v1997
    %v2003 = vmul.f32 %v1951, %v1999
    %2006 = vrot.lane.b32.xlu0 %v1992, 2
    %v2007 = vpop.permute.xlu0 %2006
    %2008 = vrot.lane.b32.xlu0 %v1993, 2
    %v2009 = vpop.permute.xlu0 %2008
    %vm2012 = vcmp.gt.f32.partialorder %v2002, %v2007
    %vm2013 = vcmp.gt.f32.partialorder %v2003, %v2009
    %v2014 = vsel %vm2012, %v2002, %v2007
    %v2015 = vsel %vm2013, %v2003, %v2009
    %2016 = vrot.lane.b32.xlu0 %v1918, 124
    %v2017 = vpop.permute.xlu0 %2016
    %2018 = vrot.lane.b32.xlu0 %v1920, 124
    %v2019 = vpop.permute.xlu0 %2018
    %v2022 = vsel %vm2012, %v2017, %v1925
    %v2023 = vsel %vm2013, %v2019, %v1927
    %2026 = vrot.lane.b32.xlu0 %v2014, 126
    %v2027 = vpop.permute.xlu0 %2026
    %2028 = vrot.lane.b32.xlu0 %v2015, 126
    %v2029 = vpop.permute.xlu0 %2028
    %vm2032 = vcmask 15360
    %v2033 = vsel %vm2032, %v2027, %v2022
    %v2034 = vsel %vm2032, %v2029, %v2023
    %2035 = vst.msk [vmem:[%s3] sm:$0xff] %vm56, %v2033
    %2036 = vst.msk [vmem:[%s3 + $0x8] sm:$0xff] %vm56, %v2034
    // Predicated region
    $region18: #{_lambda_.1} parent=1 // pred_check
      _
    $region19: #{_lambda_.1} parent=1 // pred_check_branch
      %2038 = sbr.rel (0) target = $region21
    $region20: #{_lambda_.1} parent=1 // pred_region
      _
    $region21: #{_lambda_.1} parent=1 // pred_fallthru
      _
    // Predicated region
    $region22: #{_lambda_.1} parent=1 // pred_check
      _
    $region23: #{_lambda_.1} parent=1 // pred_check_branch
      %2040 = sbr.rel (0) target = $region25
    $region24: #{_lambda_.1} parent=1 // pred_region
      _
    $region25: #{_lambda_.1} parent=1 // pred_fallthru
      _
    %2041 = vsyncpa [#allocation3], 1

</llo_original>
